<compile_context>
chip_gen: v5e
topology: v5e:2x2
jax: 0.10.0
libtpu: 0.0.40
codegen_flags: <defaults>
</compile_context>

<pallas_src>
import math

import numpy as np
import jax
import jax.numpy as jnp
from jax.experimental import pallas as pl
from jax.experimental.pallas import tpu as pltpu  # noqa: F401  (kept for parity / future tiling)

# ----------------------------- configuration --------------------------------
BATCH = 2
IMAGE_SIZE = 32
PATCH = 16
IN_CH = 3
DIM = 32            # d_model
HEADS = 4
HEAD_DIM = DIM // HEADS
MLP_DIM = 16        # dim_feedforward
DEPTH = 2
NUM_CLASSES = 7
NUM_PATCHES = (IMAGE_SIZE // PATCH) ** 2
PATCH_DIM = IN_CH * PATCH * PATCH
N_TOKENS = NUM_PATCHES + 1          # real tokens (cls + patches)
N_PAD = 8                           # tokens per batch padded to a sublane tile
BN_PAD = BATCH * N_PAD              # 16 rows
OUT_LANES = 128                     # lane-dense classifier output width
LN_EPS = 1e-5
SCALE = 1.0 / math.sqrt(HEAD_DIM)
# TODO(synk): dropout(p=0) is an identity at inference; no stochastic path implemented.


def _layer_norm(x, w, b):
    mu = jnp.mean(x, axis=-1, keepdims=True)
    var = jnp.mean(jnp.square(x - mu), axis=-1, keepdims=True)
    return (x - mu) * jax.lax.rsqrt(var + LN_EPS) * w + b


# ----------------------------- fused Pallas kernel ---------------------------
def fused_vit_kernel(patches_ref, pe_wt_ref, add_ref,
                     wqkv_ref, wo_ref, w1_ref, w2_ref,
                     bqkv_ref, bo_ref, ln1w_ref, ln1b_ref,
                     b1_ref, b2_ref, ln2w_ref, ln2b_ref,
                     hmask_ref, fc_wt_ref, fc_b_ref, o_ref):
    # ---- prologue: patch embedding + pos embed + cls token ----
    # cls / pad rows of `patches` are zero; add_ref carries cls_token for row 0,
    # (conv bias + pos_embed) for patch rows and zeros for pad rows, so one
    # bf16 matmul + one f32 add builds x0.
    x = (jnp.dot(patches_ref[...], pe_wt_ref[...],
                 preferred_element_type=jnp.float32) + add_ref[...])        # (BN_PAD, D) f32
    hmask = hmask_ref[...]      # (D, D) bf16 block-diag of SCALE: per-head score broadcast

    for l in range(DEPTH):      # static unroll; single kernel invocation
        wqkv_t = wqkv_ref[l]    # (D, 3D)  bf16
        wo_t = wo_ref[l]        # (D, D)   bf16
        w1_t = w1_ref[l]        # (D, M)   bf16
        w2_t = w2_ref[l]        # (M, D)   bf16
        bqkv = bqkv_ref[l]      # (1, 3D)  f32
        bo = bo_ref[l]          # (1, D)
        ln1w = ln1w_ref[l]
        ln1b = ln1b_ref[l]
        b1 = b1_ref[l]          # (1, M)
        b2 = b2_ref[l]
        ln2w = ln2w_ref[l]
        ln2b = ln2b_ref[l]

        # ---- QKV projection: one bf16 matmul over all (batch*token) rows ----
        qkv = (jnp.dot(x.astype(jnp.bfloat16), wqkv_t,
                       preferred_element_type=jnp.float32) + bqkv)          # (BN_PAD, 3D)
        q = qkv[:, 0:DIM]
        k = qkv[:, DIM:2 * DIM]
        v = qkv[:, 2 * DIM:3 * DIM]

        # ---- multihead attention over the batch axis (per token position) ----
        # Stack all (i, j) elementwise products and do ONE matmul with hmask:
        # it broadcasts each head's scaled score onto every lane of that head,
        # so softmax over key-batch j and the weighted V sum are pure
        # elementwise ops — no per-head slicing or cross-lane reductions.
        prods = []
        for i in range(BATCH):
            qi = q[i * N_PAD:(i + 1) * N_PAD, :]
            for j in range(BATCH):
                prods.append(qi * k[j * N_PAD:(j + 1) * N_PAD, :])
        prod = jnp.concatenate(prods, axis=0)                               # (B*B*N_PAD, D)
        s = jnp.dot(prod.astype(jnp.bfloat16), hmask,
                    preferred_element_type=jnp.float32)                     # (B*B*N_PAD, D)

        attn_rows = []
        for i in range(BATCH):
            s_i = [s[(i * BATCH + j) * N_PAD:(i * BATCH + j + 1) * N_PAD, :]
                   for j in range(BATCH)]                                   # each (N_PAD, D)
            m = s_i[0]
            for sj in s_i[1:]:
                m = jnp.maximum(m, sj)
            p_i = [jnp.exp(sj - m) for sj in s_i]
            denom = p_i[0]
            for pj in p_i[1:]:
                denom = denom + pj
            inv = pl.reciprocal(denom, approx=True)
            acc = (p_i[0] * inv) * v[0:N_PAD, :]
            for j in range(1, BATCH):
                acc = acc + (p_i[j] * inv) * v[j * N_PAD:(j + 1) * N_PAD, :]
            attn_rows.append(acc)                                           # (N_PAD, D)
        attn = jnp.concatenate(attn_rows, axis=0)                           # (BN_PAD, D)

        # ---- out-proj + residual + LN1, FFN + residual + LN2 (full width) ----
        a = (jnp.dot(attn.astype(jnp.bfloat16), wo_t,
                     preferred_element_type=jnp.float32) + bo)
        y = _layer_norm(x + a, ln1w, ln1b)
        h1 = jnp.maximum(
            jnp.dot(y.astype(jnp.bfloat16), w1_t,
                    preferred_element_type=jnp.float32) + b1, 0.0)
        h2 = (jnp.dot(h1.astype(jnp.bfloat16), w2_t,
                      preferred_element_type=jnp.float32) + b2)
        x = _layer_norm(y + h2, ln2w, ln2b)

    # ---- epilogue: classifier on ALL padded rows, one lane-dense store ----
    # (wrapper slices out rows {0, 8} / cols 0:NUM_CLASSES)
    o_ref[...] = (jnp.dot(x.astype(jnp.bfloat16), fc_wt_ref[...],
                          preferred_element_type=jnp.float32) + fc_b_ref[...])


# ----------------------------- glue (plain JAX) -------------------------------
def extract_patches(x):
    # x: (B, C, H, W) NCHW -> (B, num_patches, C*P*P), flatten order (c, kh, kw)
    b, c, hh, ww = x.shape
    nh, nw = hh // PATCH, ww // PATCH
    x = x.reshape(b, c, nh, PATCH, nw, PATCH)
    x = x.transpose(0, 2, 4, 1, 3, 5)
    return x.reshape(b, nh * nw, c * PATCH * PATCH)
# TODO(synk): the NCHW->patch flatten stays as XLA glue; a gather-style BlockSpec
# inside the kernel is not worth it at this size.


@jax.jit
def vit_forward_pallas(x_img, pk):
    patches = extract_patches(x_img)                             # (B, NP, PD)
    # zero row in front for the cls slot + zero rows at the back to pad to N_PAD
    patches = jnp.pad(patches, ((0, 0), (1, N_PAD - NUM_PATCHES - 1), (0, 0)))
    patches = patches.reshape(BN_PAD, PATCH_DIM).astype(jnp.bfloat16)
    out_full = pl.pallas_call(
        fused_vit_kernel,
        out_shape=jax.ShapeDtypeStruct((BN_PAD, OUT_LANES), jnp.float32),
    )(patches, pk["pe_wt"], pk["add_rows"],
      pk["wqkv_t"], pk["wo_t"], pk["w1_t"], pk["w2_t"],
      pk["bqkv"], pk["bo"], pk["ln1w"], pk["ln1b"],
      pk["b1"], pk["b2"], pk["ln2w"], pk["ln2b"],
      pk["hmask"], pk["fc_wt"], pk["fc_b"])
    # cls token of each batch element lives at row b * N_PAD
    return out_full.reshape(BATCH, N_PAD, OUT_LANES)[:, 0, :NUM_CLASSES]


# ----------------------------- one-time param packing -------------------------
def pack_params(p):
    """One-time repack: pre-transpose all weights and cast MXU operands to bf16,
    fold conv bias / pos-embed / cls-token into a single additive row table
    (padded to N_PAD rows per batch), pre-scale the head-broadcast mask, and pad
    the classifier to a lane-dense 128-wide output."""
    lp = p["layers"]
    bf16 = jnp.bfloat16

    row_add = jnp.concatenate([
        p["cls_token"][0],                                        # (1, D) cls row
        p["b_pe"][None, :] + p["pos_embed"][0],                   # (NP, D) patch rows
        jnp.zeros((N_PAD - NUM_PATCHES - 1, DIM), jnp.float32),   # pad rows
    ], axis=0)                                                    # (N_PAD, D)

    hmask = SCALE * jnp.kron(jnp.eye(HEADS, dtype=jnp.float32),
                             jnp.ones((HEAD_DIM, HEAD_DIM), jnp.float32))    # (D, D)

    fc_wt = jnp.pad(p["w_fc"].T, ((0, 0), (0, OUT_LANES - NUM_CLASSES)))     # (D, 128)
    fc_b = jnp.pad(p["b_fc"].reshape(1, NUM_CLASSES),
                   ((0, 0), (0, OUT_LANES - NUM_CLASSES)))                   # (1, 128)

    return {
        "pe_wt": p["w_pe"].T.astype(bf16),                        # (PATCH_DIM, D)
        "add_rows": jnp.tile(row_add, (BATCH, 1)),                # (BN_PAD, D) f32
        "wqkv_t": jnp.swapaxes(lp["wqkv"], 1, 2).astype(bf16),    # (DEPTH, D, 3D)
        "wo_t": jnp.swapaxes(lp["wo"], 1, 2).astype(bf16),        # (DEPTH, D, D)
        "w1_t": jnp.swapaxes(lp["w1"], 1, 2).astype(bf16),        # (DEPTH, D, M)
        "w2_t": jnp.swapaxes(lp["w2"], 1, 2).astype(bf16),        # (DEPTH, M, D)
        "bqkv": lp["bqkv"],                                       # (DEPTH, 1, 3D) f32
        "bo": lp["bo"],
        "ln1w": lp["ln1w"], "ln1b": lp["ln1b"],
        "b1": lp["b1"], "b2": lp["b2"],
        "ln2w": lp["ln2w"], "ln2b": lp["ln2b"],
        "hmask": hmask.astype(bf16),                              # (D, D) bf16
        "fc_wt": fc_wt.astype(bf16),                              # (D, 128) bf16
        "fc_b": fc_b,                                             # (1, 128) f32
    }


# ----------------------------- parameter init ---------------------------------
def init_params(key):
    ks = jax.random.split(key, 7)

    def nrm(k, shape, s=0.02):
        return s * jax.random.normal(k, shape, dtype=jnp.float32)

    p = {
        "w_pe": nrm(ks[0], (DIM, PATCH_DIM)),          # Conv2d weight, reshaped
        "b_pe": nrm(ks[1], (DIM,)),
        "pos_embed": nrm(ks[2], (1, NUM_PATCHES, DIM)),
        "cls_token": nrm(ks[3], (1, 1, DIM)),
        "w_fc": nrm(ks[4], (NUM_CLASSES, DIM)),
        "b_fc": nrm(ks[5], (NUM_CLASSES,)),
    }

    def layer_params(k):
        kk = jax.random.split(k, 12)
        return dict(
            wqkv=nrm(kk[0], (3 * DIM, DIM), 0.05),
            bqkv=nrm(kk[1], (1, 3 * DIM), 0.05),
            wo=nrm(kk[2], (DIM, DIM), 0.05),
            bo=nrm(kk[3], (1, DIM), 0.05),
            ln1w=1.0 + nrm(kk[4], (1, DIM), 0.01),
            ln1b=nrm(kk[5], (1, DIM), 0.01),
            w1=nrm(kk[6], (MLP_DIM, DIM), 0.05),
            b1=nrm(kk[7], (1, MLP_DIM), 0.05),
            w2=nrm(kk[8], (DIM, MLP_DIM), 0.05),
            b2=nrm(kk[9], (1, DIM), 0.05),
            ln2w=1.0 + nrm(kk[10], (1, DIM), 0.01),
            ln2b=nrm(kk[11], (1, DIM), 0.01),
        )

    layers = [layer_params(jax.random.fold_in(ks[6], d)) for d in range(DEPTH)]
    p["layers"] = {
        name: jnp.stack([l[name] for l in layers], axis=0) for name in layers[0]
    }
    return p


# ----------------------------- pure-JAX reference -----------------------------
HI = jax.lax.Precision.HIGHEST


def _encoder_layer_ref(x, lp, l):
    b, n, d = x.shape
    qkv = jnp.einsum("bnd,ed->bne", x, lp["wqkv"][l], precision=HI) + lp["bqkv"][l]
    q, k, v = qkv[..., :d], qkv[..., d:2 * d], qkv[..., 2 * d:]
    q = q.reshape(b, n, HEADS, HEAD_DIM)
    k = k.reshape(b, n, HEADS, HEAD_DIM)
    v = v.reshape(b, n, HEADS, HEAD_DIM)
    # attention over axis 0 (the batch axis), reproducing batch_first=False
    s = jnp.einsum("inhd,jnhd->nhij", q, k, precision=HI) * SCALE
    pattn = jax.nn.softmax(s, axis=-1)
    o = jnp.einsum("nhij,jnhd->inhd", pattn, v, precision=HI).reshape(b, n, d)
    attn = jnp.einsum("bnd,ed->bne", o, lp["wo"][l], precision=HI) + lp["bo"][l]
    y = _layer_norm(x + attn, lp["ln1w"][l], lp["ln1b"][l])
    h1 = jax.nn.relu(jnp.einsum("bnd,md->bnm", y, lp["w1"][l], precision=HI) + lp["b1"][l])
    h2 = jnp.einsum("bnm,dm->bnd", h1, lp["w2"][l], precision=HI) + lp["b2"][l]
    return _layer_norm(y + h2, lp["ln2w"][l], lp["ln2b"][l])


def vit_forward_ref(x_img, p):
    b = x_img.shape[0]
    patches = extract_patches(x_img)
    tok = jnp.einsum("bpk,dk->bpd", patches, p["w_pe"], precision=HI) + p["b_pe"]
    tok = tok + p["pos_embed"]
    cls = jnp.broadcast_to(p["cls_token"], (b, 1, DIM))
    x = jnp.concatenate([cls, tok], axis=1)
    for l in range(DEPTH):
        x = _encoder_layer_ref(x, p["layers"], l)
    return jnp.dot(x[:, 0], p["w_fc"].T, precision=HI) + p["b_fc"]


# ----------------------------------- main -------------------------------------
if __name__ == "__main__":
    key = jax.random.PRNGKey(0)
    kx, kp = jax.random.split(key)
    x_img = jax.random.normal(
        kx, (BATCH, IN_CH, IMAGE_SIZE, IMAGE_SIZE), dtype=jnp.float32
    )
    params = init_params(kp)
    packed = pack_params(params)

    out = jax.block_until_ready(vit_forward_pallas(x_img, packed))
    ref = jax.block_until_ready(vit_forward_ref(x_img, params))

    assert out.shape == (BATCH, NUM_CLASSES)
    # bf16 MXU operands + approx reciprocal => slightly looser tolerance than
    # the f32-HIGHEST reference, still tight enough to catch real bugs.
    np.testing.assert_allclose(np.asarray(out), np.asarray(ref), rtol=3e-2, atol=1e-2)
    print("KERNEL_OK")
</pallas_src>

<mosaic_0001>
module attributes {stable_mosaic.version = 11 : i64} {
  func.func @fused_vit_kernel(%arg0: memref<16x768xbf16, #tpu.memory_space<vmem>>, %arg1: memref<768x32xbf16, #tpu.memory_space<vmem>>, %arg2: memref<16x32xf32, #tpu.memory_space<vmem>>, %arg3: memref<2x32x96xbf16, #tpu.memory_space<vmem>>, %arg4: memref<2x32x32xbf16, #tpu.memory_space<vmem>>, %arg5: memref<2x32x16xbf16, #tpu.memory_space<vmem>>, %arg6: memref<2x16x32xbf16, #tpu.memory_space<vmem>>, %arg7: memref<2x1x96xf32, #tpu.memory_space<vmem>>, %arg8: memref<2x1x32xf32, #tpu.memory_space<vmem>>, %arg9: memref<2x1x32xf32, #tpu.memory_space<vmem>>, %arg10: memref<2x1x32xf32, #tpu.memory_space<vmem>>, %arg11: memref<2x1x16xf32, #tpu.memory_space<vmem>>, %arg12: memref<2x1x32xf32, #tpu.memory_space<vmem>>, %arg13: memref<2x1x32xf32, #tpu.memory_space<vmem>>, %arg14: memref<2x1x32xf32, #tpu.memory_space<vmem>>, %arg15: memref<32x32xbf16, #tpu.memory_space<vmem>>, %arg16: memref<32x128xbf16, #tpu.memory_space<vmem>>, %arg17: memref<1x128xf32, #tpu.memory_space<vmem>>, %arg18: memref<16x128xf32, #tpu.memory_space<vmem>>) attributes {dimension_semantics = [], scalar_prefetch = 0 : i64, scratch_operands = 0 : i64, tpu.core_type = #tpu.core_type<tc>} {
    %c0 = arith.constant 0 : index
    %c0_0 = arith.constant 0 : index
    %0 = vector.load %arg0[%c0, %c0_0] : memref<16x768xbf16, #tpu.memory_space<vmem>>, vector<16x768xbf16>
    %c0_1 = arith.constant 0 : index
    %c0_2 = arith.constant 0 : index
    %1 = vector.load %arg1[%c0_1, %c0_2] : memref<768x32xbf16, #tpu.memory_space<vmem>>, vector<768x32xbf16>
    %cst = arith.constant dense<0.000000e+00> : vector<16x32xf32>
    %2 = tpu.matmul %0, %1, %cst {dimension_numbers = #tpu.dot_dimension_numbers<[1], [0], [0], [1], [0, 0, 1, 1], [], []>} : vector<16x768xbf16>, vector<768x32xbf16>, vector<16x32xf32> -> vector<16x32xf32>
    %c0_3 = arith.constant 0 : index
    %c0_4 = arith.constant 0 : index
    %3 = vector.load %arg2[%c0_3, %c0_4] : memref<16x32xf32, #tpu.memory_space<vmem>>, vector<16x32xf32>
    %4 = arith.addf %2, %3 : vector<16x32xf32>
    %c0_5 = arith.constant 0 : index
    %c0_6 = arith.constant 0 : index
    %5 = vector.load %arg15[%c0_5, %c0_6] : memref<32x32xbf16, #tpu.memory_space<vmem>>, vector<32x32xbf16>
    %c0_7 = arith.constant 0 : index
    %c0_8 = arith.constant 0 : index
    %c0_9 = arith.constant 0 : index
    %6 = vector.load %arg3[%c0_7, %c0_8, %c0_9] : memref<2x32x96xbf16, #tpu.memory_space<vmem>>, vector<1x32x96xbf16>
    %7 = vector.shape_cast %6 : vector<1x32x96xbf16> to vector<32x96xbf16>
    %c0_10 = arith.constant 0 : index
    %c0_11 = arith.constant 0 : index
    %c0_12 = arith.constant 0 : index
    %8 = vector.load %arg4[%c0_10, %c0_11, %c0_12] : memref<2x32x32xbf16, #tpu.memory_space<vmem>>, vector<1x32x32xbf16>
    %9 = vector.shape_cast %8 : vector<1x32x32xbf16> to vector<32x32xbf16>
    %c0_13 = arith.constant 0 : index
    %c0_14 = arith.constant 0 : index
    %c0_15 = arith.constant 0 : index
    %10 = vector.load %arg5[%c0_13, %c0_14, %c0_15] : memref<2x32x16xbf16, #tpu.memory_space<vmem>>, vector<1x32x16xbf16>
    %11 = vector.shape_cast %10 : vector<1x32x16xbf16> to vector<32x16xbf16>
    %c0_16 = arith.constant 0 : index
    %c0_17 = arith.constant 0 : index
    %c0_18 = arith.constant 0 : index
    %12 = vector.load %arg6[%c0_16, %c0_17, %c0_18] : memref<2x16x32xbf16, #tpu.memory_space<vmem>>, vector<1x16x32xbf16>
    %13 = vector.shape_cast %12 : vector<1x16x32xbf16> to vector<16x32xbf16>
    %c0_19 = arith.constant 0 : index
    %c0_20 = arith.constant 0 : index
    %c0_21 = arith.constant 0 : index
    %14 = vector.load %arg7[%c0_19, %c0_20, %c0_21] : memref<2x1x96xf32, #tpu.memory_space<vmem>>, vector<1x1x96xf32>
    %15 = vector.shape_cast %14 : vector<1x1x96xf32> to vector<1x96xf32>
    %c0_22 = arith.constant 0 : index
    %c0_23 = arith.constant 0 : index
    %c0_24 = arith.constant 0 : index
    %16 = vector.load %arg8[%c0_22, %c0_23, %c0_24] : memref<2x1x32xf32, #tpu.memory_space<vmem>>, vector<1x1x32xf32>
    %17 = vector.shape_cast %16 : vector<1x1x32xf32> to vector<1x32xf32>
    %c0_25 = arith.constant 0 : index
    %c0_26 = arith.constant 0 : index
    %c0_27 = arith.constant 0 : index
    %18 = vector.load %arg9[%c0_25, %c0_26, %c0_27] : memref<2x1x32xf32, #tpu.memory_space<vmem>>, vector<1x1x32xf32>
    %19 = vector.shape_cast %18 : vector<1x1x32xf32> to vector<1x32xf32>
    %c0_28 = arith.constant 0 : index
    %c0_29 = arith.constant 0 : index
    %c0_30 = arith.constant 0 : index
    %20 = vector.load %arg10[%c0_28, %c0_29, %c0_30] : memref<2x1x32xf32, #tpu.memory_space<vmem>>, vector<1x1x32xf32>
    %21 = vector.shape_cast %20 : vector<1x1x32xf32> to vector<1x32xf32>
    %c0_31 = arith.constant 0 : index
    %c0_32 = arith.constant 0 : index
    %c0_33 = arith.constant 0 : index
    %22 = vector.load %arg11[%c0_31, %c0_32, %c0_33] : memref<2x1x16xf32, #tpu.memory_space<vmem>>, vector<1x1x16xf32>
    %23 = vector.shape_cast %22 : vector<1x1x16xf32> to vector<1x16xf32>
    %c0_34 = arith.constant 0 : index
    %c0_35 = arith.constant 0 : index
    %c0_36 = arith.constant 0 : index
    %24 = vector.load %arg12[%c0_34, %c0_35, %c0_36] : memref<2x1x32xf32, #tpu.memory_space<vmem>>, vector<1x1x32xf32>
    %25 = vector.shape_cast %24 : vector<1x1x32xf32> to vector<1x32xf32>
    %c0_37 = arith.constant 0 : index
    %c0_38 = arith.constant 0 : index
    %c0_39 = arith.constant 0 : index
    %26 = vector.load %arg13[%c0_37, %c0_38, %c0_39] : memref<2x1x32xf32, #tpu.memory_space<vmem>>, vector<1x1x32xf32>
    %27 = vector.shape_cast %26 : vector<1x1x32xf32> to vector<1x32xf32>
    %c0_40 = arith.constant 0 : index
    %c0_41 = arith.constant 0 : index
    %c0_42 = arith.constant 0 : index
    %28 = vector.load %arg14[%c0_40, %c0_41, %c0_42] : memref<2x1x32xf32, #tpu.memory_space<vmem>>, vector<1x1x32xf32>
    %29 = vector.shape_cast %28 : vector<1x1x32xf32> to vector<1x32xf32>
    %30 = arith.truncf %4 : vector<16x32xf32> to vector<16x32xbf16>
    %cst_43 = arith.constant dense<0.000000e+00> : vector<16x96xf32>
    %31 = tpu.matmul %30, %7, %cst_43 {dimension_numbers = #tpu.dot_dimension_numbers<[1], [0], [0], [1], [0, 0, 1, 1], [], []>} : vector<16x32xbf16>, vector<32x96xbf16>, vector<16x96xf32> -> vector<16x96xf32>
    %32 = vector.broadcast %15 : vector<1x96xf32> to vector<16x96xf32>
    %33 = arith.addf %31, %32 : vector<16x96xf32>
    %34 = vector.extract_strided_slice %33 {offsets = [0, 0], sizes = [16, 32], strides = [1, 1]} : vector<16x96xf32> to vector<16x32xf32>
    %35 = vector.extract_strided_slice %33 {offsets = [0, 32], sizes = [16, 32], strides = [1, 1]} : vector<16x96xf32> to vector<16x32xf32>
    %36 = vector.extract_strided_slice %33 {offsets = [0, 64], sizes = [16, 32], strides = [1, 1]} : vector<16x96xf32> to vector<16x32xf32>
    %37 = vector.extract_strided_slice %34 {offsets = [0, 0], sizes = [8, 32], strides = [1, 1]} : vector<16x32xf32> to vector<8x32xf32>
    %38 = vector.extract_strided_slice %35 {offsets = [0, 0], sizes = [8, 32], strides = [1, 1]} : vector<16x32xf32> to vector<8x32xf32>
    %39 = arith.mulf %37, %38 : vector<8x32xf32>
    %40 = vector.extract_strided_slice %35 {offsets = [8, 0], sizes = [8, 32], strides = [1, 1]} : vector<16x32xf32> to vector<8x32xf32>
    %41 = arith.mulf %37, %40 : vector<8x32xf32>
    %42 = vector.extract_strided_slice %34 {offsets = [8, 0], sizes = [8, 32], strides = [1, 1]} : vector<16x32xf32> to vector<8x32xf32>
    %43 = vector.extract_strided_slice %35 {offsets = [0, 0], sizes = [8, 32], strides = [1, 1]} : vector<16x32xf32> to vector<8x32xf32>
    %44 = arith.mulf %42, %43 : vector<8x32xf32>
    %45 = vector.extract_strided_slice %35 {offsets = [8, 0], sizes = [8, 32], strides = [1, 1]} : vector<16x32xf32> to vector<8x32xf32>
    %46 = arith.mulf %42, %45 : vector<8x32xf32>
    %47 = tpu.concatenate %39, %41, %44, %46 in 0 : vector<8x32xf32>, vector<8x32xf32>, vector<8x32xf32>, vector<8x32xf32> -> vector<32x32xf32>
    %48 = arith.truncf %47 : vector<32x32xf32> to vector<32x32xbf16>
    %cst_44 = arith.constant dense<0.000000e+00> : vector<32x32xf32>
    %49 = tpu.matmul %48, %5, %cst_44 {dimension_numbers = #tpu.dot_dimension_numbers<[1], [0], [0], [1], [0, 0, 1, 1], [], []>} : vector<32x32xbf16>, vector<32x32xbf16>, vector<32x32xf32> -> vector<32x32xf32>
    %50 = vector.extract_strided_slice %49 {offsets = [0, 0], sizes = [8, 32], strides = [1, 1]} : vector<32x32xf32> to vector<8x32xf32>
    %51 = vector.extract_strided_slice %49 {offsets = [8, 0], sizes = [8, 32], strides = [1, 1]} : vector<32x32xf32> to vector<8x32xf32>
    %52 = arith.maximumf %50, %51 : vector<8x32xf32>
    %53 = arith.subf %50, %52 : vector<8x32xf32>
    %54 = math.exp %53 : vector<8x32xf32>
    %55 = arith.subf %51, %52 : vector<8x32xf32>
    %56 = math.exp %55 : vector<8x32xf32>
    %57 = arith.addf %54, %56 : vector<8x32xf32>
    %58 = tpu.reciprocal %57 {approx = true} : vector<8x32xf32> -> vector<8x32xf32>
    %59 = arith.mulf %54, %58 : vector<8x32xf32>
    %60 = vector.extract_strided_slice %36 {offsets = [0, 0], sizes = [8, 32], strides = [1, 1]} : vector<16x32xf32> to vector<8x32xf32>
    %61 = arith.mulf %59, %60 : vector<8x32xf32>
    %62 = arith.mulf %56, %58 : vector<8x32xf32>
    %63 = vector.extract_strided_slice %36 {offsets = [8, 0], sizes = [8, 32], strides = [1, 1]} : vector<16x32xf32> to vector<8x32xf32>
    %64 = arith.mulf %62, %63 : vector<8x32xf32>
    %65 = arith.addf %61, %64 : vector<8x32xf32>
    %66 = vector.extract_strided_slice %49 {offsets = [16, 0], sizes = [8, 32], strides = [1, 1]} : vector<32x32xf32> to vector<8x32xf32>
    %67 = vector.extract_strided_slice %49 {offsets = [24, 0], sizes = [8, 32], strides = [1, 1]} : vector<32x32xf32> to vector<8x32xf32>
    %68 = arith.maximumf %66, %67 : vector<8x32xf32>
    %69 = arith.subf %66, %68 : vector<8x32xf32>
    %70 = math.exp %69 : vector<8x32xf32>
    %71 = arith.subf %67, %68 : vector<8x32xf32>
    %72 = math.exp %71 : vector<8x32xf32>
    %73 = arith.addf %70, %72 : vector<8x32xf32>
    %74 = tpu.reciprocal %73 {approx = true} : vector<8x32xf32> -> vector<8x32xf32>
    %75 = arith.mulf %70, %74 : vector<8x32xf32>
    %76 = vector.extract_strided_slice %36 {offsets = [0, 0], sizes = [8, 32], strides = [1, 1]} : vector<16x32xf32> to vector<8x32xf32>
    %77 = arith.mulf %75, %76 : vector<8x32xf32>
    %78 = arith.mulf %72, %74 : vector<8x32xf32>
    %79 = vector.extract_strided_slice %36 {offsets = [8, 0], sizes = [8, 32], strides = [1, 1]} : vector<16x32xf32> to vector<8x32xf32>
    %80 = arith.mulf %78, %79 : vector<8x32xf32>
    %81 = arith.addf %77, %80 : vector<8x32xf32>
    %82 = tpu.concatenate %65, %81 in 0 : vector<8x32xf32>, vector<8x32xf32> -> vector<16x32xf32>
    %83 = arith.truncf %82 : vector<16x32xf32> to vector<16x32xbf16>
    %cst_45 = arith.constant dense<0.000000e+00> : vector<16x32xf32>
    %84 = tpu.matmul %83, %9, %cst_45 {dimension_numbers = #tpu.dot_dimension_numbers<[1], [0], [0], [1], [0, 0, 1, 1], [], []>} : vector<16x32xbf16>, vector<32x32xbf16>, vector<16x32xf32> -> vector<16x32xf32>
    %85 = vector.broadcast %17 : vector<1x32xf32> to vector<16x32xf32>
    %86 = arith.addf %84, %85 : vector<16x32xf32>
    %87 = arith.addf %4, %86 : vector<16x32xf32>
    %cst_46 = arith.constant dense<0.000000e+00> : vector<16xf32>
    %88 = vector.multi_reduction <add>, %87, %cst_46 [1] : vector<16x32xf32> to vector<16xf32>
    %89 = vector.shape_cast %88 : vector<16xf32> to vector<16x1xf32>
    %cst_47 = arith.constant 3.200000e+01 : f32
    %90 = vector.broadcast %cst_47 : f32 to vector<16x1xf32>
    %91 = arith.divf %89, %90 : vector<16x1xf32>
    %92 = vector.broadcast %91 : vector<16x1xf32> to vector<16x32xf32>
    %93 = arith.subf %87, %92 : vector<16x32xf32>
    %94 = arith.mulf %93, %93 : vector<16x32xf32>
    %cst_48 = arith.constant dense<0.000000e+00> : vector<16xf32>
    %95 = vector.multi_reduction <add>, %94, %cst_48 [1] : vector<16x32xf32> to vector<16xf32>
    %96 = vector.shape_cast %95 : vector<16xf32> to vector<16x1xf32>
    %cst_49 = arith.constant 3.200000e+01 : f32
    %97 = vector.broadcast %cst_49 : f32 to vector<16x1xf32>
    %98 = arith.divf %96, %97 : vector<16x1xf32>
    %99 = vector.broadcast %91 : vector<16x1xf32> to vector<16x32xf32>
    %100 = arith.subf %87, %99 : vector<16x32xf32>
    %cst_50 = arith.constant 9.99999974E-6 : f32
    %101 = vector.broadcast %cst_50 : f32 to vector<16x1xf32>
    %102 = arith.addf %98, %101 : vector<16x1xf32>
    %103 = math.rsqrt %102 : vector<16x1xf32>
    %104 = vector.broadcast %103 : vector<16x1xf32> to vector<16x32xf32>
    %105 = arith.mulf %100, %104 : vector<16x32xf32>
    %106 = vector.broadcast %19 : vector<1x32xf32> to vector<16x32xf32>
    %107 = arith.mulf %105, %106 : vector<16x32xf32>
    %108 = vector.broadcast %21 : vector<1x32xf32> to vector<16x32xf32>
    %109 = arith.addf %107, %108 : vector<16x32xf32>
    %110 = arith.truncf %109 : vector<16x32xf32> to vector<16x32xbf16>
    %cst_51 = arith.constant dense<0.000000e+00> : vector<16x16xf32>
    %111 = tpu.matmul %110, %11, %cst_51 {dimension_numbers = #tpu.dot_dimension_numbers<[1], [0], [0], [1], [0, 0, 1, 1], [], []>} : vector<16x32xbf16>, vector<32x16xbf16>, vector<16x16xf32> -> vector<16x16xf32>
    %112 = vector.broadcast %23 : vector<1x16xf32> to vector<16x16xf32>
    %113 = arith.addf %111, %112 : vector<16x16xf32>
    %cst_52 = arith.constant 0.000000e+00 : f32
    %114 = vector.broadcast %cst_52 : f32 to vector<16x16xf32>
    %115 = arith.maximumf %113, %114 : vector<16x16xf32>
    %116 = arith.truncf %115 : vector<16x16xf32> to vector<16x16xbf16>
    %cst_53 = arith.constant dense<0.000000e+00> : vector<16x32xf32>
    %117 = tpu.matmul %116, %13, %cst_53 {dimension_numbers = #tpu.dot_dimension_numbers<[1], [0], [0], [1], [0, 0, 1, 1], [], []>} : vector<16x16xbf16>, vector<16x32xbf16>, vector<16x32xf32> -> vector<16x32xf32>
    %118 = vector.broadcast %25 : vector<1x32xf32> to vector<16x32xf32>
    %119 = arith.addf %117, %118 : vector<16x32xf32>
    %120 = arith.addf %109, %119 : vector<16x32xf32>
    %cst_54 = arith.constant dense<0.000000e+00> : vector<16xf32>
    %121 = vector.multi_reduction <add>, %120, %cst_54 [1] : vector<16x32xf32> to vector<16xf32>
    %122 = vector.shape_cast %121 : vector<16xf32> to vector<16x1xf32>
    %cst_55 = arith.constant 3.200000e+01 : f32
    %123 = vector.broadcast %cst_55 : f32 to vector<16x1xf32>
    %124 = arith.divf %122, %123 : vector<16x1xf32>
    %125 = vector.broadcast %124 : vector<16x1xf32> to vector<16x32xf32>
    %126 = arith.subf %120, %125 : vector<16x32xf32>
    %127 = arith.mulf %126, %126 : vector<16x32xf32>
    %cst_56 = arith.constant dense<0.000000e+00> : vector<16xf32>
    %128 = vector.multi_reduction <add>, %127, %cst_56 [1] : vector<16x32xf32> to vector<16xf32>
    %129 = vector.shape_cast %128 : vector<16xf32> to vector<16x1xf32>
    %cst_57 = arith.constant 3.200000e+01 : f32
    %130 = vector.broadcast %cst_57 : f32 to vector<16x1xf32>
    %131 = arith.divf %129, %130 : vector<16x1xf32>
    %132 = vector.broadcast %124 : vector<16x1xf32> to vector<16x32xf32>
    %133 = arith.subf %120, %132 : vector<16x32xf32>
    %cst_58 = arith.constant 9.99999974E-6 : f32
    %134 = vector.broadcast %cst_58 : f32 to vector<16x1xf32>
    %135 = arith.addf %131, %134 : vector<16x1xf32>
    %136 = math.rsqrt %135 : vector<16x1xf32>
    %137 = vector.broadcast %136 : vector<16x1xf32> to vector<16x32xf32>
    %138 = arith.mulf %133, %137 : vector<16x32xf32>
    %139 = vector.broadcast %27 : vector<1x32xf32> to vector<16x32xf32>
    %140 = arith.mulf %138, %139 : vector<16x32xf32>
    %141 = vector.broadcast %29 : vector<1x32xf32> to vector<16x32xf32>
    %142 = arith.addf %140, %141 : vector<16x32xf32>
    %c1 = arith.constant 1 : index
    %c0_59 = arith.constant 0 : index
    %c0_60 = arith.constant 0 : index
    %143 = vector.load %arg3[%c1, %c0_59, %c0_60] : memref<2x32x96xbf16, #tpu.memory_space<vmem>>, vector<1x32x96xbf16>
    %144 = vector.shape_cast %143 : vector<1x32x96xbf16> to vector<32x96xbf16>
    %c1_61 = arith.constant 1 : index
    %c0_62 = arith.constant 0 : index
    %c0_63 = arith.constant 0 : index
    %145 = vector.load %arg4[%c1_61, %c0_62, %c0_63] : memref<2x32x32xbf16, #tpu.memory_space<vmem>>, vector<1x32x32xbf16>
    %146 = vector.shape_cast %145 : vector<1x32x32xbf16> to vector<32x32xbf16>
    %c1_64 = arith.constant 1 : index
    %c0_65 = arith.constant 0 : index
    %c0_66 = arith.constant 0 : index
    %147 = vector.load %arg5[%c1_64, %c0_65, %c0_66] : memref<2x32x16xbf16, #tpu.memory_space<vmem>>, vector<1x32x16xbf16>
    %148 = vector.shape_cast %147 : vector<1x32x16xbf16> to vector<32x16xbf16>
    %c1_67 = arith.constant 1 : index
    %c0_68 = arith.constant 0 : index
    %c0_69 = arith.constant 0 : index
    %149 = vector.load %arg6[%c1_67, %c0_68, %c0_69] : memref<2x16x32xbf16, #tpu.memory_space<vmem>>, vector<1x16x32xbf16>
    %150 = vector.shape_cast %149 : vector<1x16x32xbf16> to vector<16x32xbf16>
    %c1_70 = arith.constant 1 : index
    %c0_71 = arith.constant 0 : index
    %c0_72 = arith.constant 0 : index
    %151 = vector.load %arg7[%c1_70, %c0_71, %c0_72] : memref<2x1x96xf32, #tpu.memory_space<vmem>>, vector<1x1x96xf32>
    %152 = vector.shape_cast %151 : vector<1x1x96xf32> to vector<1x96xf32>
    %c1_73 = arith.constant 1 : index
    %c0_74 = arith.constant 0 : index
    %c0_75 = arith.constant 0 : index
    %153 = vector.load %arg8[%c1_73, %c0_74, %c0_75] : memref<2x1x32xf32, #tpu.memory_space<vmem>>, vector<1x1x32xf32>
    %154 = vector.shape_cast %153 : vector<1x1x32xf32> to vector<1x32xf32>
    %c1_76 = arith.constant 1 : index
    %c0_77 = arith.constant 0 : index
    %c0_78 = arith.constant 0 : index
    %155 = vector.load %arg9[%c1_76, %c0_77, %c0_78] : memref<2x1x32xf32, #tpu.memory_space<vmem>>, vector<1x1x32xf32>
    %156 = vector.shape_cast %155 : vector<1x1x32xf32> to vector<1x32xf32>
    %c1_79 = arith.constant 1 : index
    %c0_80 = arith.constant 0 : index
    %c0_81 = arith.constant 0 : index
    %157 = vector.load %arg10[%c1_79, %c0_80, %c0_81] : memref<2x1x32xf32, #tpu.memory_space<vmem>>, vector<1x1x32xf32>
    %158 = vector.shape_cast %157 : vector<1x1x32xf32> to vector<1x32xf32>
    %c1_82 = arith.constant 1 : index
    %c0_83 = arith.constant 0 : index
    %c0_84 = arith.constant 0 : index
    %159 = vector.load %arg11[%c1_82, %c0_83, %c0_84] : memref<2x1x16xf32, #tpu.memory_space<vmem>>, vector<1x1x16xf32>
    %160 = vector.shape_cast %159 : vector<1x1x16xf32> to vector<1x16xf32>
    %c1_85 = arith.constant 1 : index
    %c0_86 = arith.constant 0 : index
    %c0_87 = arith.constant 0 : index
    %161 = vector.load %arg12[%c1_85, %c0_86, %c0_87] : memref<2x1x32xf32, #tpu.memory_space<vmem>>, vector<1x1x32xf32>
    %162 = vector.shape_cast %161 : vector<1x1x32xf32> to vector<1x32xf32>
    %c1_88 = arith.constant 1 : index
    %c0_89 = arith.constant 0 : index
    %c0_90 = arith.constant 0 : index
    %163 = vector.load %arg13[%c1_88, %c0_89, %c0_90] : memref<2x1x32xf32, #tpu.memory_space<vmem>>, vector<1x1x32xf32>
    %164 = vector.shape_cast %163 : vector<1x1x32xf32> to vector<1x32xf32>
    %c1_91 = arith.constant 1 : index
    %c0_92 = arith.constant 0 : index
    %c0_93 = arith.constant 0 : index
    %165 = vector.load %arg14[%c1_91, %c0_92, %c0_93] : memref<2x1x32xf32, #tpu.memory_space<vmem>>, vector<1x1x32xf32>
    %166 = vector.shape_cast %165 : vector<1x1x32xf32> to vector<1x32xf32>
    %167 = arith.truncf %142 : vector<16x32xf32> to vector<16x32xbf16>
    %cst_94 = arith.constant dense<0.000000e+00> : vector<16x96xf32>
    %168 = tpu.matmul %167, %144, %cst_94 {dimension_numbers = #tpu.dot_dimension_numbers<[1], [0], [0], [1], [0, 0, 1, 1], [], []>} : vector<16x32xbf16>, vector<32x96xbf16>, vector<16x96xf32> -> vector<16x96xf32>
    %169 = vector.broadcast %152 : vector<1x96xf32> to vector<16x96xf32>
    %170 = arith.addf %168, %169 : vector<16x96xf32>
    %171 = vector.extract_strided_slice %170 {offsets = [0, 0], sizes = [16, 32], strides = [1, 1]} : vector<16x96xf32> to vector<16x32xf32>
    %172 = vector.extract_strided_slice %170 {offsets = [0, 32], sizes = [16, 32], strides = [1, 1]} : vector<16x96xf32> to vector<16x32xf32>
    %173 = vector.extract_strided_slice %170 {offsets = [0, 64], sizes = [16, 32], strides = [1, 1]} : vector<16x96xf32> to vector<16x32xf32>
    %174 = vector.extract_strided_slice %171 {offsets = [0, 0], sizes = [8, 32], strides = [1, 1]} : vector<16x32xf32> to vector<8x32xf32>
    %175 = vector.extract_strided_slice %172 {offsets = [0, 0], sizes = [8, 32], strides = [1, 1]} : vector<16x32xf32> to vector<8x32xf32>
    %176 = arith.mulf %174, %175 : vector<8x32xf32>
    %177 = vector.extract_strided_slice %172 {offsets = [8, 0], sizes = [8, 32], strides = [1, 1]} : vector<16x32xf32> to vector<8x32xf32>
    %178 = arith.mulf %174, %177 : vector<8x32xf32>
    %179 = vector.extract_strided_slice %171 {offsets = [8, 0], sizes = [8, 32], strides = [1, 1]} : vector<16x32xf32> to vector<8x32xf32>
    %180 = vector.extract_strided_slice %172 {offsets = [0, 0], sizes = [8, 32], strides = [1, 1]} : vector<16x32xf32> to vector<8x32xf32>
    %181 = arith.mulf %179, %180 : vector<8x32xf32>
    %182 = vector.extract_strided_slice %172 {offsets = [8, 0], sizes = [8, 32], strides = [1, 1]} : vector<16x32xf32> to vector<8x32xf32>
    %183 = arith.mulf %179, %182 : vector<8x32xf32>
    %184 = tpu.concatenate %176, %178, %181, %183 in 0 : vector<8x32xf32>, vector<8x32xf32>, vector<8x32xf32>, vector<8x32xf32> -> vector<32x32xf32>
    %185 = arith.truncf %184 : vector<32x32xf32> to vector<32x32xbf16>
    %cst_95 = arith.constant dense<0.000000e+00> : vector<32x32xf32>
    %186 = tpu.matmul %185, %5, %cst_95 {dimension_numbers = #tpu.dot_dimension_numbers<[1], [0], [0], [1], [0, 0, 1, 1], [], []>} : vector<32x32xbf16>, vector<32x32xbf16>, vector<32x32xf32> -> vector<32x32xf32>
    %187 = vector.extract_strided_slice %186 {offsets = [0, 0], sizes = [8, 32], strides = [1, 1]} : vector<32x32xf32> to vector<8x32xf32>
    %188 = vector.extract_strided_slice %186 {offsets = [8, 0], sizes = [8, 32], strides = [1, 1]} : vector<32x32xf32> to vector<8x32xf32>
    %189 = arith.maximumf %187, %188 : vector<8x32xf32>
    %190 = arith.subf %187, %189 : vector<8x32xf32>
    %191 = math.exp %190 : vector<8x32xf32>
    %192 = arith.subf %188, %189 : vector<8x32xf32>
    %193 = math.exp %192 : vector<8x32xf32>
    %194 = arith.addf %191, %193 : vector<8x32xf32>
    %195 = tpu.reciprocal %194 {approx = true} : vector<8x32xf32> -> vector<8x32xf32>
    %196 = arith.mulf %191, %195 : vector<8x32xf32>
    %197 = vector.extract_strided_slice %173 {offsets = [0, 0], sizes = [8, 32], strides = [1, 1]} : vector<16x32xf32> to vector<8x32xf32>
    %198 = arith.mulf %196, %197 : vector<8x32xf32>
    %199 = arith.mulf %193, %195 : vector<8x32xf32>
    %200 = vector.extract_strided_slice %173 {offsets = [8, 0], sizes = [8, 32], strides = [1, 1]} : vector<16x32xf32> to vector<8x32xf32>
    %201 = arith.mulf %199, %200 : vector<8x32xf32>
    %202 = arith.addf %198, %201 : vector<8x32xf32>
    %203 = vector.extract_strided_slice %186 {offsets = [16, 0], sizes = [8, 32], strides = [1, 1]} : vector<32x32xf32> to vector<8x32xf32>
    %204 = vector.extract_strided_slice %186 {offsets = [24, 0], sizes = [8, 32], strides = [1, 1]} : vector<32x32xf32> to vector<8x32xf32>
    %205 = arith.maximumf %203, %204 : vector<8x32xf32>
    %206 = arith.subf %203, %205 : vector<8x32xf32>
    %207 = math.exp %206 : vector<8x32xf32>
    %208 = arith.subf %204, %205 : vector<8x32xf32>
    %209 = math.exp %208 : vector<8x32xf32>
    %210 = arith.addf %207, %209 : vector<8x32xf32>
    %211 = tpu.reciprocal %210 {approx = true} : vector<8x32xf32> -> vector<8x32xf32>
    %212 = arith.mulf %207, %211 : vector<8x32xf32>
    %213 = vector.extract_strided_slice %173 {offsets = [0, 0], sizes = [8, 32], strides = [1, 1]} : vector<16x32xf32> to vector<8x32xf32>
    %214 = arith.mulf %212, %213 : vector<8x32xf32>
    %215 = arith.mulf %209, %211 : vector<8x32xf32>
    %216 = vector.extract_strided_slice %173 {offsets = [8, 0], sizes = [8, 32], strides = [1, 1]} : vector<16x32xf32> to vector<8x32xf32>
    %217 = arith.mulf %215, %216 : vector<8x32xf32>
    %218 = arith.addf %214, %217 : vector<8x32xf32>
    %219 = tpu.concatenate %202, %218 in 0 : vector<8x32xf32>, vector<8x32xf32> -> vector<16x32xf32>
    %220 = arith.truncf %219 : vector<16x32xf32> to vector<16x32xbf16>
    %cst_96 = arith.constant dense<0.000000e+00> : vector<16x32xf32>
    %221 = tpu.matmul %220, %146, %cst_96 {dimension_numbers = #tpu.dot_dimension_numbers<[1], [0], [0], [1], [0, 0, 1, 1], [], []>} : vector<16x32xbf16>, vector<32x32xbf16>, vector<16x32xf32> -> vector<16x32xf32>
    %222 = vector.broadcast %154 : vector<1x32xf32> to vector<16x32xf32>
    %223 = arith.addf %221, %222 : vector<16x32xf32>
    %224 = arith.addf %142, %223 : vector<16x32xf32>
    %cst_97 = arith.constant dense<0.000000e+00> : vector<16xf32>
    %225 = vector.multi_reduction <add>, %224, %cst_97 [1] : vector<16x32xf32> to vector<16xf32>
    %226 = vector.shape_cast %225 : vector<16xf32> to vector<16x1xf32>
    %cst_98 = arith.constant 3.200000e+01 : f32
    %227 = vector.broadcast %cst_98 : f32 to vector<16x1xf32>
    %228 = arith.divf %226, %227 : vector<16x1xf32>
    %229 = vector.broadcast %228 : vector<16x1xf32> to vector<16x32xf32>
    %230 = arith.subf %224, %229 : vector<16x32xf32>
    %231 = arith.mulf %230, %230 : vector<16x32xf32>
    %cst_99 = arith.constant dense<0.000000e+00> : vector<16xf32>
    %232 = vector.multi_reduction <add>, %231, %cst_99 [1] : vector<16x32xf32> to vector<16xf32>
    %233 = vector.shape_cast %232 : vector<16xf32> to vector<16x1xf32>
    %cst_100 = arith.constant 3.200000e+01 : f32
    %234 = vector.broadcast %cst_100 : f32 to vector<16x1xf32>
    %235 = arith.divf %233, %234 : vector<16x1xf32>
    %236 = vector.broadcast %228 : vector<16x1xf32> to vector<16x32xf32>
    %237 = arith.subf %224, %236 : vector<16x32xf32>
    %cst_101 = arith.constant 9.99999974E-6 : f32
    %238 = vector.broadcast %cst_101 : f32 to vector<16x1xf32>
    %239 = arith.addf %235, %238 : vector<16x1xf32>
    %240 = math.rsqrt %239 : vector<16x1xf32>
    %241 = vector.broadcast %240 : vector<16x1xf32> to vector<16x32xf32>
    %242 = arith.mulf %237, %241 : vector<16x32xf32>
    %243 = vector.broadcast %156 : vector<1x32xf32> to vector<16x32xf32>
    %244 = arith.mulf %242, %243 : vector<16x32xf32>
    %245 = vector.broadcast %158 : vector<1x32xf32> to vector<16x32xf32>
    %246 = arith.addf %244, %245 : vector<16x32xf32>
    %247 = arith.truncf %246 : vector<16x32xf32> to vector<16x32xbf16>
    %cst_102 = arith.constant dense<0.000000e+00> : vector<16x16xf32>
    %248 = tpu.matmul %247, %148, %cst_102 {dimension_numbers = #tpu.dot_dimension_numbers<[1], [0], [0], [1], [0, 0, 1, 1], [], []>} : vector<16x32xbf16>, vector<32x16xbf16>, vector<16x16xf32> -> vector<16x16xf32>
    %249 = vector.broadcast %160 : vector<1x16xf32> to vector<16x16xf32>
    %250 = arith.addf %248, %249 : vector<16x16xf32>
    %cst_103 = arith.constant 0.000000e+00 : f32
    %251 = vector.broadcast %cst_103 : f32 to vector<16x16xf32>
    %252 = arith.maximumf %250, %251 : vector<16x16xf32>
    %253 = arith.truncf %252 : vector<16x16xf32> to vector<16x16xbf16>
    %cst_104 = arith.constant dense<0.000000e+00> : vector<16x32xf32>
    %254 = tpu.matmul %253, %150, %cst_104 {dimension_numbers = #tpu.dot_dimension_numbers<[1], [0], [0], [1], [0, 0, 1, 1], [], []>} : vector<16x16xbf16>, vector<16x32xbf16>, vector<16x32xf32> -> vector<16x32xf32>
    %255 = vector.broadcast %162 : vector<1x32xf32> to vector<16x32xf32>
    %256 = arith.addf %254, %255 : vector<16x32xf32>
    %257 = arith.addf %246, %256 : vector<16x32xf32>
    %cst_105 = arith.constant dense<0.000000e+00> : vector<16xf32>
    %258 = vector.multi_reduction <add>, %257, %cst_105 [1] : vector<16x32xf32> to vector<16xf32>
    %259 = vector.shape_cast %258 : vector<16xf32> to vector<16x1xf32>
    %cst_106 = arith.constant 3.200000e+01 : f32
    %260 = vector.broadcast %cst_106 : f32 to vector<16x1xf32>
    %261 = arith.divf %259, %260 : vector<16x1xf32>
    %262 = vector.broadcast %261 : vector<16x1xf32> to vector<16x32xf32>
    %263 = arith.subf %257, %262 : vector<16x32xf32>
    %264 = arith.mulf %263, %263 : vector<16x32xf32>
    %cst_107 = arith.constant dense<0.000000e+00> : vector<16xf32>
    %265 = vector.multi_reduction <add>, %264, %cst_107 [1] : vector<16x32xf32> to vector<16xf32>
    %266 = vector.shape_cast %265 : vector<16xf32> to vector<16x1xf32>
    %cst_108 = arith.constant 3.200000e+01 : f32
    %267 = vector.broadcast %cst_108 : f32 to vector<16x1xf32>
    %268 = arith.divf %266, %267 : vector<16x1xf32>
    %269 = vector.broadcast %261 : vector<16x1xf32> to vector<16x32xf32>
    %270 = arith.subf %257, %269 : vector<16x32xf32>
    %cst_109 = arith.constant 9.99999974E-6 : f32
    %271 = vector.broadcast %cst_109 : f32 to vector<16x1xf32>
    %272 = arith.addf %268, %271 : vector<16x1xf32>
    %273 = math.rsqrt %272 : vector<16x1xf32>
    %274 = vector.broadcast %273 : vector<16x1xf32> to vector<16x32xf32>
    %275 = arith.mulf %270, %274 : vector<16x32xf32>
    %276 = vector.broadcast %164 : vector<1x32xf32> to vector<16x32xf32>
    %277 = arith.mulf %275, %276 : vector<16x32xf32>
    %278 = vector.broadcast %166 : vector<1x32xf32> to vector<16x32xf32>
    %279 = arith.addf %277, %278 : vector<16x32xf32>
    %280 = arith.truncf %279 : vector<16x32xf32> to vector<16x32xbf16>
    %c0_110 = arith.constant 0 : index
    %c0_111 = arith.constant 0 : index
    %281 = vector.load %arg16[%c0_110, %c0_111] : memref<32x128xbf16, #tpu.memory_space<vmem>>, vector<32x128xbf16>
    %cst_112 = arith.constant dense<0.000000e+00> : vector<16x128xf32>
    %282 = tpu.matmul %280, %281, %cst_112 {dimension_numbers = #tpu.dot_dimension_numbers<[1], [0], [0], [1], [0, 0, 1, 1], [], []>} : vector<16x32xbf16>, vector<32x128xbf16>, vector<16x128xf32> -> vector<16x128xf32>
    %c0_113 = arith.constant 0 : index
    %c0_114 = arith.constant 0 : index
    %283 = vector.load %arg17[%c0_113, %c0_114] : memref<1x128xf32, #tpu.memory_space<vmem>>, vector<1x128xf32>
    %284 = vector.broadcast %283 : vector<1x128xf32> to vector<16x128xf32>
    %285 = arith.addf %282, %284 : vector<16x128xf32>
    %c0_115 = arith.constant 0 : index
    %c0_116 = arith.constant 0 : index
    %286 = vector.load %arg18[%c0_115, %c0_116] : memref<16x128xf32, #tpu.memory_space<vmem>>, vector<16x128xf32>
    tpu.vector_store %arg18[%c0_115, %c0_116], %285 {strides = array<i32>} : memref<16x128xf32, #tpu.memory_space<vmem>>, vector<16x128xf32>,
    return
  }
}

</mosaic_0001>

<llo_original>
// kernel: vit_forward_pallas.1
$region0: #{vit_forward_pallas.1}
  #allocation0 [shape = 'u32[]', space=smem, size = 0x4, offset = 0x4, fixed_abs, tag = 'smem constant byte address 0x4 - core index']
  #allocation1 [shape = 'u32[72,128]{1,0:T(1,128)}', space=vmem, size = 0x9000, scoped, tag = 'internal scratch']
  %s0 = inlined_call_operand.vmem [shape: bf16[16,768], index: 0, kind: input, shape index: {}]
  %s1 = inlined_call_operand.vmem [shape: bf16[768,32], index: 1, kind: input, shape index: {}]
  %s2 = inlined_call_operand.vmem [shape: f32[16,32], index: 2, kind: input, shape index: {}]
  %s3 = inlined_call_operand.vmem [shape: bf16[2,32,96], index: 3, kind: input, shape index: {}]
  %s4 = inlined_call_operand.vmem [shape: bf16[2,32,32], index: 4, kind: input, shape index: {}]
  %s5 = inlined_call_operand.vmem [shape: bf16[2,32,16], index: 5, kind: input, shape index: {}]
  %s6 = inlined_call_operand.vmem [shape: bf16[2,16,32], index: 6, kind: input, shape index: {}]
  %s7 = inlined_call_operand.vmem [shape: f32[2,1,96], index: 7, kind: input, shape index: {}]
  %s8 = inlined_call_operand.vmem [shape: f32[2,1,32], index: 8, kind: input, shape index: {}]
  %s9 = inlined_call_operand.vmem [shape: f32[2,1,32], index: 9, kind: input, shape index: {}]
  %s10 = inlined_call_operand.vmem [shape: f32[2,1,32], index: 10, kind: input, shape index: {}]
  %s11 = inlined_call_operand.vmem [shape: f32[2,1,16], index: 11, kind: input, shape index: {}]
  %s12 = inlined_call_operand.vmem [shape: f32[2,1,32], index: 12, kind: input, shape index: {}]
  %s13 = inlined_call_operand.vmem [shape: f32[2,1,32], index: 13, kind: input, shape index: {}]
  %s14 = inlined_call_operand.vmem [shape: f32[2,1,32], index: 14, kind: input, shape index: {}]
  %s15 = inlined_call_operand.vmem [shape: bf16[32,32], index: 15, kind: input, shape index: {}]
  %s16 = inlined_call_operand.vmem [shape: bf16[32,128], index: 16, kind: input, shape index: {}]
  %s17 = inlined_call_operand.vmem [shape: f32[1,128], index: 17, kind: input, shape index: {}]
  %s18 = inlined_call_operand.vmem [shape: f32[16,128], index: 18, kind: output, shape index: {}]
  %s19 = sld [smem:[#allocation0]]
  $region82: #{vit_forward_pallas.1} parent=0
    _
  %s21 = ssub.s32 1, %s19
  %s22 = scalar_select 0, %s21, %s19
  // Predicated region
  $region2: #{vit_forward_pallas.1} parent=0 // pred_check
    _
  $region3: #{vit_forward_pallas.1} parent=0 // pred_check_branch
    %24 = sbr.rel (0) target = $region5
  $region4: #{vit_forward_pallas.1} parent=0 // pred_region
    _
  $region5: #{vit_forward_pallas.1} parent=0 // pred_fallthru
    _
  // Predicated region
  $region6: #{vit_forward_pallas.1} parent=0 // pred_check
    _
  $region7: #{vit_forward_pallas.1} parent=0 // pred_check_branch
    %26 = sbr.rel (0) target = $region9
  $region8: #{vit_forward_pallas.1} parent=0 // pred_region
    _
  $region9: #{vit_forward_pallas.1} parent=0 // pred_fallthru
    _
  // Predicated region
  $region10: #{vit_forward_pallas.1} parent=0 // pred_check
    _
  $region11: #{vit_forward_pallas.1} parent=0 // pred_check_branch
    %28 = sbr.rel (0) target = $region13
  $region12: #{vit_forward_pallas.1} parent=0 // pred_region
    _
  $region13: #{vit_forward_pallas.1} parent=0 // pred_fallthru
    _
  // Predicated region
  $region14: #{vit_forward_pallas.1} parent=0 // pred_check
    _
  $region15: #{vit_forward_pallas.1} parent=0 // pred_check_branch
    %30 = sbr.rel (0) target = $region17
  $region16: #{vit_forward_pallas.1} parent=0 // pred_region
    _
  $region17: #{vit_forward_pallas.1} parent=0 // pred_fallthru
    _
  // Predicated region
  $region18: #{vit_forward_pallas.1} parent=0 // pred_check
    _
  $region19: #{vit_forward_pallas.1} parent=0 // pred_check_branch
    %32 = sbr.rel (0) target = $region21
  $region20: #{vit_forward_pallas.1} parent=0 // pred_region
    _
  $region21: #{vit_forward_pallas.1} parent=0 // pred_fallthru
    _
  // Predicated region
  $region22: #{vit_forward_pallas.1} parent=0 // pred_check
    _
  $region23: #{vit_forward_pallas.1} parent=0 // pred_check_branch
    %34 = sbr.rel (0) target = $region25
  $region24: #{vit_forward_pallas.1} parent=0 // pred_region
    _
  $region25: #{vit_forward_pallas.1} parent=0 // pred_fallthru
    _
  // Predicated region
  $region26: #{vit_forward_pallas.1} parent=0 // pred_check
    _
  $region27: #{vit_forward_pallas.1} parent=0 // pred_check_branch
    %36 = sbr.rel (0) target = $region29
  $region28: #{vit_forward_pallas.1} parent=0 // pred_region
    _
  $region29: #{vit_forward_pallas.1} parent=0 // pred_fallthru
    _
  // Predicated region
  $region30: #{vit_forward_pallas.1} parent=0 // pred_check
    _
  $region31: #{vit_forward_pallas.1} parent=0 // pred_check_branch
    %38 = sbr.rel (0) target = $region33
  $region32: #{vit_forward_pallas.1} parent=0 // pred_region
    _
  $region33: #{vit_forward_pallas.1} parent=0 // pred_fallthru
    _
  // Predicated region
  $region34: #{vit_forward_pallas.1} parent=0 // pred_check
    _
  $region35: #{vit_forward_pallas.1} parent=0 // pred_check_branch
    %40 = sbr.rel (0) target = $region37
  $region36: #{vit_forward_pallas.1} parent=0 // pred_region
    _
  $region37: #{vit_forward_pallas.1} parent=0 // pred_fallthru
    _
  // Predicated region
  $region38: #{vit_forward_pallas.1} parent=0 // pred_check
    _
  $region39: #{vit_forward_pallas.1} parent=0 // pred_check_branch
    %42 = sbr.rel (0) target = $region41
  $region40: #{vit_forward_pallas.1} parent=0 // pred_region
    _
  $region41: #{vit_forward_pallas.1} parent=0 // pred_fallthru
    _
  // Predicated region
  $region42: #{vit_forward_pallas.1} parent=0 // pred_check
    _
  $region43: #{vit_forward_pallas.1} parent=0 // pred_check_branch
    %44 = sbr.rel (0) target = $region45
  $region44: #{vit_forward_pallas.1} parent=0 // pred_region
    _
  $region45: #{vit_forward_pallas.1} parent=0 // pred_fallthru
    _
  // Predicated region
  $region46: #{vit_forward_pallas.1} parent=0 // pred_check
    _
  $region47: #{vit_forward_pallas.1} parent=0 // pred_check_branch
    %46 = sbr.rel (0) target = $region49
  $region48: #{vit_forward_pallas.1} parent=0 // pred_region
    _
  $region49: #{vit_forward_pallas.1} parent=0 // pred_fallthru
    _
  // Predicated region
  $region50: #{vit_forward_pallas.1} parent=0 // pred_check
    _
  $region51: #{vit_forward_pallas.1} parent=0 // pred_check_branch
    %48 = sbr.rel (0) target = $region53
  $region52: #{vit_forward_pallas.1} parent=0 // pred_region
    _
  $region53: #{vit_forward_pallas.1} parent=0 // pred_fallthru
    _
  // Predicated region
  $region54: #{vit_forward_pallas.1} parent=0 // pred_check
    _
  $region55: #{vit_forward_pallas.1} parent=0 // pred_check_branch
    %50 = sbr.rel (0) target = $region57
  $region56: #{vit_forward_pallas.1} parent=0 // pred_region
    _
  $region57: #{vit_forward_pallas.1} parent=0 // pred_fallthru
    _
  // Predicated region
  $region58: #{vit_forward_pallas.1} parent=0 // pred_check
    _
  $region59: #{vit_forward_pallas.1} parent=0 // pred_check_branch
    %52 = sbr.rel (0) target = $region61
  $region60: #{vit_forward_pallas.1} parent=0 // pred_region
    _
  $region61: #{vit_forward_pallas.1} parent=0 // pred_fallthru
    _
  // Predicated region
  $region62: #{vit_forward_pallas.1} parent=0 // pred_check
    _
  $region63: #{vit_forward_pallas.1} parent=0 // pred_check_branch
    %54 = sbr.rel (0) target = $region65
  $region64: #{vit_forward_pallas.1} parent=0 // pred_region
    _
  $region65: #{vit_forward_pallas.1} parent=0 // pred_fallthru
    _
  // Predicated region
  $region66: #{vit_forward_pallas.1} parent=0 // pred_check
    _
  $region67: #{vit_forward_pallas.1} parent=0 // pred_check_branch
    %56 = sbr.rel (0) target = $region69
  $region68: #{vit_forward_pallas.1} parent=0 // pred_region
    _
  $region69: #{vit_forward_pallas.1} parent=0 // pred_fallthru
    _
  // Predicated region
  $region70: #{vit_forward_pallas.1} parent=0 // pred_check
    _
  $region71: #{vit_forward_pallas.1} parent=0 // pred_check_branch
    %58 = sbr.rel (0) target = $region73
  $region72: #{vit_forward_pallas.1} parent=0 // pred_region
    _
  $region73: #{vit_forward_pallas.1} parent=0 // pred_fallthru
    _
  %v60 = vld [vmem:[%s0] sm:$0xff]
  %v61 = vld [vmem:[%s0 + $0x8] sm:$0xff]
  %v62 = vld [vmem:[%s0 + $0x10] sm:$0xff]
  %v63 = vld [vmem:[%s0 + $0x18] sm:$0xff]
  %v64 = vld [vmem:[%s0 + $0x20] sm:$0xff]
  %v65 = vld [vmem:[%s0 + $0x28] sm:$0xff]
  %v66 = vld [vmem:[%s1] sm:$0xf]
  %v67 = vld [vmem:[%s1 + $0x4] sm:$0xf]
  %v68 = vld [vmem:[%s1 + $0x8] sm:$0xf]
  %v69 = vld [vmem:[%s1 + $0xc] sm:$0xf]
  %v70 = vld [vmem:[%s1 + $0x10] sm:$0xf]
  %v71 = vld [vmem:[%s1 + $0x14] sm:$0xf]
  %v72 = vld [vmem:[%s1 + $0x18] sm:$0xf]
  %v73 = vld [vmem:[%s1 + $0x1c] sm:$0xf]
  %v74 = vld [vmem:[%s1 + $0x20] sm:$0xf]
  %v75 = vld [vmem:[%s1 + $0x24] sm:$0xf]
  %v76 = vld [vmem:[%s1 + $0x28] sm:$0xf]
  %v77 = vld [vmem:[%s1 + $0x2c] sm:$0xf]
  %v78 = vld [vmem:[%s1 + $0x30] sm:$0xf]
  %v79 = vld [vmem:[%s1 + $0x34] sm:$0xf]
  %v80 = vld [vmem:[%s1 + $0x38] sm:$0xf]
  %v81 = vld [vmem:[%s1 + $0x3c] sm:$0xf]
  %v82 = vld [vmem:[%s1 + $0x40] sm:$0xf]
  %v83 = vld [vmem:[%s1 + $0x44] sm:$0xf]
  %v84 = vld [vmem:[%s1 + $0x48] sm:$0xf]
  %v85 = vld [vmem:[%s1 + $0x4c] sm:$0xf]
  %v86 = vld [vmem:[%s1 + $0x50] sm:$0xf]
  %v87 = vld [vmem:[%s1 + $0x54] sm:$0xf]
  %v88 = vld [vmem:[%s1 + $0x58] sm:$0xf]
  %v89 = vld [vmem:[%s1 + $0x5c] sm:$0xf]
  %v90 = vld [vmem:[%s1 + $0x60] sm:$0xf]
  %v91 = vld [vmem:[%s1 + $0x64] sm:$0xf]
  %v92 = vld [vmem:[%s1 + $0x68] sm:$0xf]
  %v93 = vld [vmem:[%s1 + $0x6c] sm:$0xf]
  %v94 = vld [vmem:[%s1 + $0x70] sm:$0xf]
  %v95 = vld [vmem:[%s1 + $0x74] sm:$0xf]
  %v96 = vld [vmem:[%s1 + $0x78] sm:$0xf]
  %v97 = vld [vmem:[%s1 + $0x7c] sm:$0xf]
  %v98 = vld [vmem:[%s1 + $0x80] sm:$0xf]
  %v99 = vld [vmem:[%s1 + $0x84] sm:$0xf]
  %v100 = vld [vmem:[%s1 + $0x88] sm:$0xf]
  %v101 = vld [vmem:[%s1 + $0x8c] sm:$0xf]
  %v102 = vld [vmem:[%s1 + $0x90] sm:$0xf]
  %v103 = vld [vmem:[%s1 + $0x94] sm:$0xf]
  %v104 = vld [vmem:[%s1 + $0x98] sm:$0xf]
  %v105 = vld [vmem:[%s1 + $0x9c] sm:$0xf]
  %v106 = vld [vmem:[%s1 + $0xa0] sm:$0xf]
  %v107 = vld [vmem:[%s1 + $0xa4] sm:$0xf]
  %v108 = vld [vmem:[%s1 + $0xa8] sm:$0xf]
  %v109 = vld [vmem:[%s1 + $0xac] sm:$0xf]
  %v110 = vld [vmem:[%s1 + $0xb0] sm:$0xf]
  %v111 = vld [vmem:[%s1 + $0xb4] sm:$0xf]
  %v112 = vld [vmem:[%s1 + $0xb8] sm:$0xf]
  %v113 = vld [vmem:[%s1 + $0xbc] sm:$0xf]
  %v114 = vld [vmem:[%s1 + $0xc0] sm:$0xf]
  %v115 = vld [vmem:[%s1 + $0xc4] sm:$0xf]
  %v116 = vld [vmem:[%s1 + $0xc8] sm:$0xf]
  %v117 = vld [vmem:[%s1 + $0xcc] sm:$0xf]
  %v118 = vld [vmem:[%s1 + $0xd0] sm:$0xf]
  %v119 = vld [vmem:[%s1 + $0xd4] sm:$0xf]
  %v120 = vld [vmem:[%s1 + $0xd8] sm:$0xf]
  %v121 = vld [vmem:[%s1 + $0xdc] sm:$0xf]
  %v122 = vld [vmem:[%s1 + $0xe0] sm:$0xf]
  %v123 = vld [vmem:[%s1 + $0xe4] sm:$0xf]
  %v124 = vld [vmem:[%s1 + $0xe8] sm:$0xf]
  %v125 = vld [vmem:[%s1 + $0xec] sm:$0xf]
  %v126 = vld [vmem:[%s1 + $0xf0] sm:$0xf]
  %v127 = vld [vmem:[%s1 + $0xf4] sm:$0xf]
  %v128 = vld [vmem:[%s1 + $0xf8] sm:$0xf]
  %v129 = vld [vmem:[%s1 + $0xfc] sm:$0xf]
  %v130 = vld [vmem:[%s1 + $0x100] sm:$0xf]
  %v131 = vld [vmem:[%s1 + $0x104] sm:$0xf]
  %v132 = vld [vmem:[%s1 + $0x108] sm:$0xf]
  %v133 = vld [vmem:[%s1 + $0x10c] sm:$0xf]
  %v134 = vld [vmem:[%s1 + $0x110] sm:$0xf]
  %v135 = vld [vmem:[%s1 + $0x114] sm:$0xf]
  %v136 = vld [vmem:[%s1 + $0x118] sm:$0xf]
  %v137 = vld [vmem:[%s1 + $0x11c] sm:$0xf]
  %v138 = vld [vmem:[%s1 + $0x120] sm:$0xf]
  %v139 = vld [vmem:[%s1 + $0x124] sm:$0xf]
  %v140 = vld [vmem:[%s1 + $0x128] sm:$0xf]
  %v141 = vld [vmem:[%s1 + $0x12c] sm:$0xf]
  %v142 = vld [vmem:[%s1 + $0x130] sm:$0xf]
  %v143 = vld [vmem:[%s1 + $0x134] sm:$0xf]
  %v144 = vld [vmem:[%s1 + $0x138] sm:$0xf]
  %v145 = vld [vmem:[%s1 + $0x13c] sm:$0xf]
  %v146 = vld [vmem:[%s1 + $0x140] sm:$0xf]
  %v147 = vld [vmem:[%s1 + $0x144] sm:$0xf]
  %v148 = vld [vmem:[%s1 + $0x148] sm:$0xf]
  %v149 = vld [vmem:[%s1 + $0x14c] sm:$0xf]
  %v150 = vld [vmem:[%s1 + $0x150] sm:$0xf]
  %v151 = vld [vmem:[%s1 + $0x154] sm:$0xf]
  %v152 = vld [vmem:[%s1 + $0x158] sm:$0xf]
  %v153 = vld [vmem:[%s1 + $0x15c] sm:$0xf]
  %v154 = vld [vmem:[%s1 + $0x160] sm:$0xf]
  %v155 = vld [vmem:[%s1 + $0x164] sm:$0xf]
  %v156 = vld [vmem:[%s1 + $0x168] sm:$0xf]
  %v157 = vld [vmem:[%s1 + $0x16c] sm:$0xf]
  %v158 = vld [vmem:[%s1 + $0x170] sm:$0xf]
  %v159 = vld [vmem:[%s1 + $0x174] sm:$0xf]
  %v160 = vld [vmem:[%s1 + $0x178] sm:$0xf]
  %v161 = vld [vmem:[%s1 + $0x17c] sm:$0xf]
  %v162 = vld [vmem:[%s2] sm:$0xff]
  %v163 = vld [vmem:[%s2 + $0x8] sm:$0xff]
  %v170 = vunpack.c.l.b16 %v60
  %v171 = vunpack.c.h.b16 %v60
  %v172 = vunpack.c.l.b16 %v61
  %v173 = vunpack.c.h.b16 %v61
  %v174 = vunpack.c.l.b16 %v62
  %v175 = vunpack.c.h.b16 %v62
  %v176 = vunpack.c.l.b16 %v63
  %v177 = vunpack.c.h.b16 %v63
  %v178 = vunpack.c.l.b16 %v64
  %v179 = vunpack.c.h.b16 %v64
  %v180 = vunpack.c.l.b16 %v65
  %v181 = vunpack.c.h.b16 %v65
  %v182 = vpack.c.b16 %v176, %v170
  %v183 = vpack.c.b16 %v177, %v171
  %v184 = vpack.c.b16 %v178, %v172
  %v185 = vpack.c.b16 %v179, %v173
  %v186 = vpack.c.b16 %v180, %v174
  %v187 = vpack.c.b16 %v181, %v175
  %v290 = vunpack.c.l.b16 %v66
  %v291 = vunpack.c.l.b16 %v67
  %v292 = vunpack.c.l.b16 %v68
  %v293 = vunpack.c.l.b16 %v69
  %v294 = vunpack.c.l.b16 %v70
  %v295 = vunpack.c.l.b16 %v71
  %v296 = vunpack.c.l.b16 %v72
  %v297 = vunpack.c.l.b16 %v73
  %v298 = vunpack.c.l.b16 %v74
  %v299 = vunpack.c.l.b16 %v75
  %v300 = vunpack.c.l.b16 %v76
  %v301 = vunpack.c.l.b16 %v77
  %v302 = vunpack.c.l.b16 %v78
  %v303 = vunpack.c.l.b16 %v79
  %v304 = vunpack.c.l.b16 %v80
  %v305 = vunpack.c.l.b16 %v81
  %v306 = vunpack.c.l.b16 %v82
  %v307 = vunpack.c.l.b16 %v83
  %v308 = vunpack.c.l.b16 %v84
  %v309 = vunpack.c.l.b16 %v85
  %v310 = vunpack.c.l.b16 %v86
  %v311 = vunpack.c.l.b16 %v87
  %v312 = vunpack.c.l.b16 %v88
  %v313 = vunpack.c.l.b16 %v89
  %v314 = vunpack.c.l.b16 %v90
  %v315 = vunpack.c.l.b16 %v91
  %v316 = vunpack.c.l.b16 %v92
  %v317 = vunpack.c.l.b16 %v93
  %v318 = vunpack.c.l.b16 %v94
  %v319 = vunpack.c.l.b16 %v95
  %v320 = vunpack.c.l.b16 %v96
  %v321 = vunpack.c.l.b16 %v97
  %v322 = vunpack.c.l.b16 %v98
  %v323 = vunpack.c.l.b16 %v99
  %v324 = vunpack.c.l.b16 %v100
  %v325 = vunpack.c.l.b16 %v101
  %v326 = vunpack.c.l.b16 %v102
  %v327 = vunpack.c.l.b16 %v103
  %v328 = vunpack.c.l.b16 %v104
  %v329 = vunpack.c.l.b16 %v105
  %v330 = vunpack.c.l.b16 %v106
  %v331 = vunpack.c.l.b16 %v107
  %v332 = vunpack.c.l.b16 %v108
  %v333 = vunpack.c.l.b16 %v109
  %v334 = vunpack.c.l.b16 %v110
  %v335 = vunpack.c.l.b16 %v111
  %v336 = vunpack.c.l.b16 %v112
  %v337 = vunpack.c.l.b16 %v113
  %v338 = vunpack.c.l.b16 %v114
  %v339 = vunpack.c.l.b16 %v115
  %v340 = vunpack.c.l.b16 %v116
  %v341 = vunpack.c.l.b16 %v117
  %v342 = vunpack.c.l.b16 %v118
  %v343 = vunpack.c.l.b16 %v119
  %v344 = vunpack.c.l.b16 %v120
  %v345 = vunpack.c.l.b16 %v121
  %v346 = vunpack.c.l.b16 %v122
  %v347 = vunpack.c.l.b16 %v123
  %v348 = vunpack.c.l.b16 %v124
  %v349 = vunpack.c.l.b16 %v125
  %v350 = vunpack.c.l.b16 %v126
  %v351 = vunpack.c.l.b16 %v127
  %v352 = vunpack.c.l.b16 %v128
  %v353 = vunpack.c.l.b16 %v129
  %v354 = vunpack.c.l.b16 %v130
  %v355 = vunpack.c.l.b16 %v131
  %v356 = vunpack.c.l.b16 %v132
  %v357 = vunpack.c.l.b16 %v133
  %v358 = vunpack.c.l.b16 %v134
  %v359 = vunpack.c.l.b16 %v135
  %v360 = vunpack.c.l.b16 %v136
  %v361 = vunpack.c.l.b16 %v137
  %v362 = vunpack.c.l.b16 %v138
  %v363 = vunpack.c.l.b16 %v139
  %v364 = vunpack.c.l.b16 %v140
  %v365 = vunpack.c.l.b16 %v141
  %v366 = vunpack.c.l.b16 %v142
  %v367 = vunpack.c.l.b16 %v143
  %v368 = vunpack.c.l.b16 %v144
  %v369 = vunpack.c.l.b16 %v145
  %v370 = vunpack.c.l.b16 %v146
  %v371 = vunpack.c.l.b16 %v147
  %v372 = vunpack.c.l.b16 %v148
  %v373 = vunpack.c.l.b16 %v149
  %v374 = vunpack.c.l.b16 %v150
  %v375 = vunpack.c.l.b16 %v151
  %v376 = vunpack.c.l.b16 %v152
  %v377 = vunpack.c.l.b16 %v153
  %v378 = vunpack.c.l.b16 %v154
  %v379 = vunpack.c.l.b16 %v155
  %v380 = vunpack.c.l.b16 %v156
  %v381 = vunpack.c.l.b16 %v157
  %v382 = vunpack.c.l.b16 %v158
  %v383 = vunpack.c.l.b16 %v159
  %v384 = vunpack.c.l.b16 %v160
  %v385 = vunpack.c.l.b16 %v161
  %v386 = vpack.c.b16 %v291, %v290
  %v387 = vpack.c.b16 %v293, %v292
  %v388 = vpack.c.b16 %v295, %v294
  %v389 = vpack.c.b16 %v297, %v296
  %v390 = vpack.c.b16 %v299, %v298
  %v391 = vpack.c.b16 %v301, %v300
  %v392 = vpack.c.b16 %v303, %v302
  %v393 = vpack.c.b16 %v305, %v304
  %v394 = vpack.c.b16 %v307, %v306
  %v395 = vpack.c.b16 %v309, %v308
  %v396 = vpack.c.b16 %v311, %v310
  %v397 = vpack.c.b16 %v313, %v312
  %v398 = vpack.c.b16 %v315, %v314
  %v399 = vpack.c.b16 %v317, %v316
  %v400 = vpack.c.b16 %v319, %v318
  %v401 = vpack.c.b16 %v321, %v320
  %v402 = vpack.c.b16 %v323, %v322
  %v403 = vpack.c.b16 %v325, %v324
  %v404 = vpack.c.b16 %v327, %v326
  %v405 = vpack.c.b16 %v329, %v328
  %v406 = vpack.c.b16 %v331, %v330
  %v407 = vpack.c.b16 %v333, %v332
  %v408 = vpack.c.b16 %v335, %v334
  %v409 = vpack.c.b16 %v337, %v336
  %v410 = vpack.c.b16 %v339, %v338
  %v411 = vpack.c.b16 %v341, %v340
  %v412 = vpack.c.b16 %v343, %v342
  %v413 = vpack.c.b16 %v345, %v344
  %v414 = vpack.c.b16 %v347, %v346
  %v415 = vpack.c.b16 %v349, %v348
  %v416 = vpack.c.b16 %v351, %v350
  %v417 = vpack.c.b16 %v353, %v352
  %v418 = vpack.c.b16 %v355, %v354
  %v419 = vpack.c.b16 %v357, %v356
  %v420 = vpack.c.b16 %v359, %v358
  %v421 = vpack.c.b16 %v361, %v360
  %v422 = vpack.c.b16 %v363, %v362
  %v423 = vpack.c.b16 %v365, %v364
  %v424 = vpack.c.b16 %v367, %v366
  %v425 = vpack.c.b16 %v369, %v368
  %v426 = vpack.c.b16 %v371, %v370
  %v427 = vpack.c.b16 %v373, %v372
  %v428 = vpack.c.b16 %v375, %v374
  %v429 = vpack.c.b16 %v377, %v376
  %v430 = vpack.c.b16 %v379, %v378
  %v431 = vpack.c.b16 %v381, %v380
  %v432 = vpack.c.b16 %v383, %v382
  %v433 = vpack.c.b16 %v385, %v384
  %482 = vmatpush.bf16.msra.mxu0 %v393
  %483 = vmatpush.bf16.msra.mxu0 %v392
  %484 = vmatpush.bf16.msra.mxu0 %v391
  %485 = vmatpush.bf16.msra.mxu0 %v390
  %486 = vmatpush.bf16.msra.mxu0 %v389
  %487 = vmatpush.bf16.msra.mxu0 %v388
  %488 = vmatpush.bf16.msra.mxu0 %v387
  %489 = vmatpush.bf16.msra.mxu0 %v386
  %490 = vmatmul.bf16.gmra.mxu0 %v182
  %v491 = vpop.f32.mrf.mxu0
  %v492 = vadd.f32 %v162, %v491
  %v493 = vpop.f32.mrf.mxu0
  %v494 = vadd.f32 %v163, %v493
  %495 = vdwg.mxu0
  %496 = vmatpush.bf16.msra.mxu0 %v401
  %497 = vmatpush.bf16.msra.mxu0 %v400
  %498 = vmatpush.bf16.msra.mxu0 %v399
  %499 = vmatpush.bf16.msra.mxu0 %v398
  %500 = vmatpush.bf16.msra.mxu0 %v397
  %501 = vmatpush.bf16.msra.mxu0 %v396
  %502 = vmatpush.bf16.msra.mxu0 %v395
  %503 = vmatpush.bf16.msra.mxu0 %v394
  %504 = vmatmul.bf16.gmra.mxu0 %v183
  %v505 = vpop.f32.mrf.mxu0
  %v506 = vadd.f32 %v492, %v505
  %v507 = vpop.f32.mrf.mxu0
  %v508 = vadd.f32 %v494, %v507
  %509 = vdwg.mxu0
  %510 = vmatpush.bf16.msra.mxu0 %v409
  %511 = vmatpush.bf16.msra.mxu0 %v408
  %512 = vmatpush.bf16.msra.mxu0 %v407
  %513 = vmatpush.bf16.msra.mxu0 %v406
  %514 = vmatpush.bf16.msra.mxu0 %v405
  %515 = vmatpush.bf16.msra.mxu0 %v404
  %516 = vmatpush.bf16.msra.mxu0 %v403
  %517 = vmatpush.bf16.msra.mxu0 %v402
  %518 = vmatmul.bf16.gmra.mxu0 %v184
  %v519 = vpop.f32.mrf.mxu0
  %v520 = vadd.f32 %v506, %v519
  %v521 = vpop.f32.mrf.mxu0
  %v522 = vadd.f32 %v508, %v521
  %523 = vdwg.mxu0
  %524 = vmatpush.bf16.msra.mxu0 %v417
  %525 = vmatpush.bf16.msra.mxu0 %v416
  %526 = vmatpush.bf16.msra.mxu0 %v415
  %527 = vmatpush.bf16.msra.mxu0 %v414
  %528 = vmatpush.bf16.msra.mxu0 %v413
  %529 = vmatpush.bf16.msra.mxu0 %v412
  %530 = vmatpush.bf16.msra.mxu0 %v411
  %531 = vmatpush.bf16.msra.mxu0 %v410
  %532 = vmatmul.bf16.gmra.mxu0 %v185
  %v533 = vpop.f32.mrf.mxu0
  %v534 = vadd.f32 %v520, %v533
  %v535 = vpop.f32.mrf.mxu0
  %v536 = vadd.f32 %v522, %v535
  %537 = vdwg.mxu0
  %538 = vmatpush.bf16.msra.mxu0 %v425
  %539 = vmatpush.bf16.msra.mxu0 %v424
  %540 = vmatpush.bf16.msra.mxu0 %v423
  %541 = vmatpush.bf16.msra.mxu0 %v422
  %542 = vmatpush.bf16.msra.mxu0 %v421
  %543 = vmatpush.bf16.msra.mxu0 %v420
  %544 = vmatpush.bf16.msra.mxu0 %v419
  %545 = vmatpush.bf16.msra.mxu0 %v418
  %546 = vmatmul.bf16.gmra.mxu0 %v186
  %v547 = vpop.f32.mrf.mxu0
  %v548 = vadd.f32 %v534, %v547
  %v549 = vpop.f32.mrf.mxu0
  %v550 = vadd.f32 %v536, %v549
  %551 = vdwg.mxu0
  %552 = vmatpush.bf16.msra.mxu0 %v433
  %553 = vmatpush.bf16.msra.mxu0 %v432
  %554 = vmatpush.bf16.msra.mxu0 %v431
  %555 = vmatpush.bf16.msra.mxu0 %v430
  %556 = vmatpush.bf16.msra.mxu0 %v429
  %557 = vmatpush.bf16.msra.mxu0 %v428
  %558 = vmatpush.bf16.msra.mxu0 %v427
  %559 = vmatpush.bf16.msra.mxu0 %v426
  %560 = vmatmul.bf16.gmra.mxu0 %v187
  %v561 = vpop.f32.mrf.mxu0
  %v562 = vadd.f32 %v548, %v561
  %v563 = vpop.f32.mrf.mxu0
  %v564 = vadd.f32 %v550, %v563
  %565 = vdwg.mxu0
  %v566 = vld [vmem:[%s15] sm:$0xf]
  %v567 = vld [vmem:[%s15 + $0x4] sm:$0xf]
  %v568 = vld [vmem:[%s15 + $0x8] sm:$0xf]
  %v569 = vld [vmem:[%s15 + $0xc] sm:$0xf]
  %v570 = vld [vmem:[%s3] sm:$0xf]
  %v571 = vld [vmem:[%s3 + $0x4] sm:$0xf]
  %v572 = vld [vmem:[%s3 + $0x8] sm:$0xf]
  %v573 = vld [vmem:[%s3 + $0xc] sm:$0xf]
  %v574 = vld [vmem:[%s4] sm:$0xf]
  %v575 = vld [vmem:[%s4 + $0x4] sm:$0xf]
  %v576 = vld [vmem:[%s4 + $0x8] sm:$0xf]
  %v577 = vld [vmem:[%s4 + $0xc] sm:$0xf]
  %v578 = vld [vmem:[%s5] sm:$0xf]
  %v579 = vld [vmem:[%s5 + $0x4] sm:$0xf]
  %v580 = vld [vmem:[%s5 + $0x8] sm:$0xf]
  %v581 = vld [vmem:[%s5 + $0xc] sm:$0xf]
  %v582 = vld [vmem:[%s6] sm:$0xf]
  %v583 = vld [vmem:[%s6 + $0x4] sm:$0xf]
  %v584 = vld [vmem:[%s7] sm:$0x1]
  %v585 = vld [vmem:[%s8] sm:$0x1]
  %v586 = vld [vmem:[%s9] sm:$0x1]
  %v587 = vld [vmem:[%s10] sm:$0x1]
  %v588 = vld [vmem:[%s11] sm:$0x1]
  %v589 = vld [vmem:[%s12] sm:$0x1]
  %v590 = vld [vmem:[%s13] sm:$0x1]
  %v591 = vld [vmem:[%s14] sm:$0x1]
  %v592 = vpack.c.bf16 %v564, %v562
  %v594 = vperm.slane %v584, 0
  %v600 = vunpack.c.l.b16 %v570
  %v601 = vunpack.c.l.b16 %v571
  %v602 = vunpack.c.l.b16 %v572
  %v603 = vunpack.c.l.b16 %v573
  %v604 = vpack.c.b16 %v601, %v600
  %v605 = vpack.c.b16 %v603, %v602
  %vm608 = vcmask 261120
  %v610 = vsel %vm608, %v592, 0
  %612 = vmatpush.bf16.msra.mxu0 0
  %613 = vmatpush.bf16.msra.mxu0 0
  %614 = vmatpush.bf16.msra.mxu0 0
  %615 = vmatpush.bf16.msra.mxu0 0
  %616 = vmatpush.bf16.msra.mxu0 0
  %617 = vmatpush.bf16.msra.mxu0 0
  %618 = vmatpush.bf16.msra.mxu0 %v605
  %619 = vmatpush.bf16.msra.mxu0 %v604
  %620 = vmatmul.bf16.gmra.mxu0 %v610
  %v621 = vpop.f32.mrf.mxu0
  %v622 = vadd.f32 %v594, %v621
  %v623 = vpop.f32.mrf.mxu0
  %v624 = vadd.f32 %v594, %v623
  %625 = vdwg.mxu0
  %627 = vrot.lane.b32.xlu0 %v622, 96
  %v628 = vpop.permute.xlu0 %627
  %v630 = vmul.f32 %v622, %v628
  %632 = vrot.lane.b32.xlu0 %v624, 96
  %v633 = vpop.permute.xlu0 %632
  %v635 = vmul.f32 %v622, %v633
  %v636 = vmul.f32 %v624, %v628
  %v637 = vmul.f32 %v624, %v633
  %v638 = vpack.c.bf16 %v635, %v630
  %v639 = vpack.c.bf16 %v637, %v636
  %v644 = vunpack.c.l.b16 %v566
  %v645 = vunpack.c.l.b16 %v567
  %v646 = vunpack.c.l.b16 %v568
  %v647 = vunpack.c.l.b16 %v569
  %v648 = vpack.c.b16 %v645, %v644
  %v649 = vpack.c.b16 %v647, %v646
  %v653 = vsel %vm608, %v638, 0
  %v656 = vsel %vm608, %v639, 0
  %658 = vmatpush.bf16.msra.mxu0 0
  %659 = vmatpush.bf16.msra.mxu0 0
  %660 = vmatpush.bf16.msra.mxu0 0
  %661 = vmatpush.bf16.msra.mxu0 0
  %662 = vmatpush.bf16.msra.mxu0 0
  %663 = vmatpush.bf16.msra.mxu0 0
  %664 = vmatpush.bf16.msra.mxu0 %v649
  %665 = vmatpush.bf16.msra.mxu0 %v648
  %666 = vmatmul.bf16.gmra.mxu0 %v653
  %v667 = vpop.f32.mrf.mxu0
  %v668 = vadd.f32 0.0, %v667
  %v669 = vpop.f32.mrf.mxu0
  %v670 = vadd.f32 0.0, %v669
  %671 = vmatmul.bf16.gmra.mxu0 %v656
  %v672 = vpop.f32.mrf.mxu0
  %v673 = vadd.f32 0.0, %v672
  %v674 = vpop.f32.mrf.mxu0
  %v675 = vadd.f32 0.0, %v674
  %676 = vdwg.mxu0
  %v677 = vmax.f32 %v668, %v670
  %v678 = vsub.f32 %v668, %v677
  %v679 = vmul.f32 %v678, 1.442695
  %v680 = vpow.pop %v679
  %v681 = vsub.f32 %v670, %v677
  %v682 = vmul.f32 %v681, 1.442695
  %v683 = vpow.pop %v682
  %v684 = vadd.f32 %v680, %v683
  %v685 = vrcp.pop %v684
  %v686 = vmul.f32 %v680, %v685
  %687 = vrot.lane.b32.xlu0 %v622, 64
  %v688 = vpop.permute.xlu0 %687
  %v690 = vmul.f32 %v686, %v688
  %v691 = vmul.f32 %v683, %v685
  %692 = vrot.lane.b32.xlu0 %v624, 64
  %v693 = vpop.permute.xlu0 %692
  %v695 = vmul.f32 %v691, %v693
  %v696 = vadd.f32 %v690, %v695
  %v697 = vmax.f32 %v673, %v675
  %v698 = vsub.f32 %v673, %v697
  %v699 = vmul.f32 %v698, 1.442695
  %v700 = vpow.pop %v699
  %v701 = vsub.f32 %v675, %v697
  %v702 = vmul.f32 %v701, 1.442695
  %v703 = vpow.pop %v702
  %v704 = vadd.f32 %v700, %v703
  %v705 = vrcp.pop %v704
  %v706 = vmul.f32 %v700, %v705
  %v707 = vmul.f32 %v706, %v688
  %v708 = vmul.f32 %v703, %v705
  %v709 = vmul.f32 %v708, %v693
  %v710 = vadd.f32 %v707, %v709
  %v711 = vpack.c.bf16 %v710, %v696
  %v713 = vperm.slane %v585, 0
  %v719 = vunpack.c.l.b16 %v574
  %v720 = vunpack.c.l.b16 %v575
  %v721 = vunpack.c.l.b16 %v576
  %v722 = vunpack.c.l.b16 %v577
  %v723 = vpack.c.b16 %v720, %v719
  %v724 = vpack.c.b16 %v722, %v721
  %v728 = vsel %vm608, %v711, 0
  %730 = vmatpush.bf16.msra.mxu0 0
  %731 = vmatpush.bf16.msra.mxu0 0
  %732 = vmatpush.bf16.msra.mxu0 0
  %733 = vmatpush.bf16.msra.mxu0 0
  %734 = vmatpush.bf16.msra.mxu0 0
  %735 = vmatpush.bf16.msra.mxu0 0
  %736 = vmatpush.bf16.msra.mxu0 %v724
  %737 = vmatpush.bf16.msra.mxu0 %v723
  %738 = vmatmul.bf16.gmra.mxu0 %v728
  %v739 = vpop.f32.mrf.mxu0
  %v740 = vadd.f32 %v713, %v739
  %v741 = vpop.f32.mrf.mxu0
  %v742 = vadd.f32 %v713, %v741
  %743 = vdwg.mxu0
  %v744 = vadd.f32 %v562, %v740
  %v745 = vadd.f32 %v564, %v742
  %v746 = vsel %vm608, %v744, 0.0
  %747 = vadd.xlane.f32.xlu0 %v746
  %v748 = vpop.xlane.xlu0 %747
  %v749 = vsel %vm608, %v745, 0.0
  %750 = vadd.xlane.f32.xlu0 %v749
  %v751 = vpop.xlane.xlu0 %750
  %v752 = vrcp.pop 32.0
  %v753 = vmul.f32 32.0, %v752
  %v754 = vsub.f32 1.0, %v753
  %v755 = vmul.f32 %v752, %v754
  %v756 = vadd.f32 %v752, %v755
  %vm757 = vweird.f32 %v752
  %v758 = vsel %vm757, %v752, %v756
  %v759 = vmul.f32 %v748, %v758
  %v760 = vmul.f32 %v751, %v758
  %v761 = vsub.f32 %v744, %v759
  %v762 = vsub.f32 %v745, %v760
  %v763 = vmul.f32 %v761, %v761
  %v764 = vmul.f32 %v762, %v762
  %v765 = vsel %vm608, %v763, 0.0
  %766 = vadd.xlane.f32.xlu0 %v765
  %v767 = vpop.xlane.xlu0 %766
  %v768 = vsel %vm608, %v764, 0.0
  %769 = vadd.xlane.f32.xlu0 %v768
  %v770 = vpop.xlane.xlu0 %769
  %v771 = vmul.f32 %v767, %v758
  %v772 = vmul.f32 %v770, %v758
  %v773 = vadd.f32 %v771, 1e-05
  %v774 = vadd.f32 %v772, 1e-05
  %v775 = vrsqrt.pop %v773
  %v776 = vmul.f32 %v775, %v773
  %v777 = vmul.f32 %v776, %v775
  %v778 = vmul.f32 0.5, %v777
  %v779 = vsub.f32 1.5, %v778
  %v780 = vmul.f32 %v775, %v779
  %vm781 = vweird.f32 %v773
  %vm782 = vweird.f32 %v775
  %vm783 = vmor %vm781, %vm782
  %v784 = vsel %vm783, %v775, %v780
  %v785 = vrsqrt.pop %v774
  %v786 = vmul.f32 %v785, %v774
  %v787 = vmul.f32 %v786, %v785
  %v788 = vmul.f32 0.5, %v787
  %v789 = vsub.f32 1.5, %v788
  %v790 = vmul.f32 %v785, %v789
  %vm791 = vweird.f32 %v774
  %vm792 = vweird.f32 %v785
  %vm793 = vmor %vm791, %vm792
  %v794 = vsel %vm793, %v785, %v790
  %v795 = vmul.f32 %v761, %v784
  %v796 = vmul.f32 %v762, %v794
  %v798 = vperm.slane %v586, 0
  %v800 = vmul.f32 %v795, %v798
  %v801 = vmul.f32 %v796, %v798
  %v803 = vperm.slane %v587, 0
  %v805 = vadd.f32 %v800, %v803
  %v806 = vadd.f32 %v801, %v803
  %v807 = vpack.c.bf16 %v806, %v805
  %v809 = vperm.slane %v588, 0
  %v815 = vunpack.c.l.b16 %v578
  %v816 = vunpack.c.l.b16 %v579
  %v817 = vunpack.c.l.b16 %v580
  %v818 = vunpack.c.l.b16 %v581
  %v819 = vpack.c.b16 %v816, %v815
  %v820 = vpack.c.b16 %v818, %v817
  %v824 = vsel %vm608, %v807, 0
  %826 = vmatpush.bf16.msra.mxu0 0
  %827 = vmatpush.bf16.msra.mxu0 0
  %828 = vmatpush.bf16.msra.mxu0 0
  %829 = vmatpush.bf16.msra.mxu0 0
  %830 = vmatpush.bf16.msra.mxu0 0
  %831 = vmatpush.bf16.msra.mxu0 0
  %832 = vmatpush.bf16.msra.mxu0 %v820
  %833 = vmatpush.bf16.msra.mxu0 %v819
  %834 = vmatmul.bf16.gmra.mxu0 %v824
  %v835 = vpop.f32.mrf.mxu0
  %v836 = vadd.f32 %v809, %v835
  %v837 = vpop.f32.mrf.mxu0
  %v838 = vadd.f32 %v809, %v837
  %839 = vdwg.mxu0
  %v840 = vmax.f32 %v836, 0.0
  %v841 = vmax.f32 %v838, 0.0
  %v842 = vpack.c.bf16 %v841, %v840
  %v844 = vperm.slane %v589, 0
  %v848 = vunpack.c.l.b16 %v582
  %v849 = vunpack.c.l.b16 %v583
  %v850 = vpack.c.b16 %v849, %v848
  %vm852 = vcmask 130048
  %v854 = vsel %vm852, %v842, 0
  %856 = vmatpush.bf16.msra.mxu0 0
  %857 = vmatpush.bf16.msra.mxu0 0
  %858 = vmatpush.bf16.msra.mxu0 0
  %859 = vmatpush.bf16.msra.mxu0 0
  %860 = vmatpush.bf16.msra.mxu0 0
  %861 = vmatpush.bf16.msra.mxu0 0
  %862 = vmatpush.bf16.msra.mxu0 0
  %863 = vmatpush.bf16.msra.mxu0 %v850
  %864 = vmatmul.bf16.gmra.mxu0 %v854
  %v865 = vpop.f32.mrf.mxu0
  %v866 = vadd.f32 %v844, %v865
  %v867 = vpop.f32.mrf.mxu0
  %v868 = vadd.f32 %v844, %v867
  %869 = vdwg.mxu0
  %v870 = vadd.f32 %v805, %v866
  %v871 = vadd.f32 %v806, %v868
  %v872 = vsel %vm608, %v870, 0.0
  %873 = vadd.xlane.f32.xlu0 %v872
  %v874 = vpop.xlane.xlu0 %873
  %v875 = vsel %vm608, %v871, 0.0
  %876 = vadd.xlane.f32.xlu0 %v875
  %v877 = vpop.xlane.xlu0 %876
  %v878 = vmul.f32 %v874, %v758
  %v879 = vmul.f32 %v877, %v758
  %v880 = vsub.f32 %v870, %v878
  %v881 = vsub.f32 %v871, %v879
  %v882 = vmul.f32 %v880, %v880
  %v883 = vmul.f32 %v881, %v881
  %v884 = vsel %vm608, %v882, 0.0
  %885 = vadd.xlane.f32.xlu0 %v884
  %v886 = vpop.xlane.xlu0 %885
  %v887 = vsel %vm608, %v883, 0.0
  %888 = vadd.xlane.f32.xlu0 %v887
  %v889 = vpop.xlane.xlu0 %888
  %v890 = vmul.f32 %v886, %v758
  %v891 = vmul.f32 %v889, %v758
  %v892 = vadd.f32 %v890, 1e-05
  %v893 = vadd.f32 %v891, 1e-05
  %v894 = vrsqrt.pop %v892
  %v895 = vmul.f32 %v894, %v892
  %v896 = vmul.f32 %v895, %v894
  %v897 = vmul.f32 0.5, %v896
  %v898 = vsub.f32 1.5, %v897
  %v899 = vmul.f32 %v894, %v898
  %vm900 = vweird.f32 %v892
  %vm901 = vweird.f32 %v894
  %vm902 = vmor %vm900, %vm901
  %v903 = vsel %vm902, %v894, %v899
  %v904 = vrsqrt.pop %v893
  %v905 = vmul.f32 %v904, %v893
  %v906 = vmul.f32 %v905, %v904
  %v907 = vmul.f32 0.5, %v906
  %v908 = vsub.f32 1.5, %v907
  %v909 = vmul.f32 %v904, %v908
  %vm910 = vweird.f32 %v893
  %vm911 = vweird.f32 %v904
  %vm912 = vmor %vm910, %vm911
  %v913 = vsel %vm912, %v904, %v909
  %v914 = vmul.f32 %v880, %v903
  %v915 = vmul.f32 %v881, %v913
  %v917 = vperm.slane %v590, 0
  %v919 = vmul.f32 %v914, %v917
  %v920 = vmul.f32 %v915, %v917
  %v922 = vperm.slane %v591, 0
  %v924 = vadd.f32 %v919, %v922
  %v925 = vadd.f32 %v920, %v922
  %s926 = scalar_lea.vmem %s3, 16
  %v927 = vld [vmem:[%s926] sm:$0xf]
  %v928 = vld [vmem:[%s926 + $0x4] sm:$0xf]
  %v929 = vld [vmem:[%s926 + $0x8] sm:$0xf]
  %v930 = vld [vmem:[%s926 + $0xc] sm:$0xf]
  %s931 = scalar_lea.vmem %s4, 16
  %v932 = vld [vmem:[%s931] sm:$0xf]
  %v933 = vld [vmem:[%s931 + $0x4] sm:$0xf]
  %v934 = vld [vmem:[%s931 + $0x8] sm:$0xf]
  %v935 = vld [vmem:[%s931 + $0xc] sm:$0xf]
  %s936 = scalar_lea.vmem %s5, 16
  %v937 = vld [vmem:[%s936] sm:$0xf]
  %v938 = vld [vmem:[%s936 + $0x4] sm:$0xf]
  %v939 = vld [vmem:[%s936 + $0x8] sm:$0xf]
  %v940 = vld [vmem:[%s936 + $0xc] sm:$0xf]
  %s941 = scalar_lea.vmem %s6, 8
  %v942 = vld [vmem:[%s941] sm:$0xf]
  %v943 = vld [vmem:[%s941 + $0x4] sm:$0xf]
  %s944 = scalar_lea.vmem %s7, 1
  %v945 = vld [vmem:[%s944] sm:$0x1]
  %s946 = scalar_lea.vmem %s8, 1
  %v947 = vld [vmem:[%s946] sm:$0x1]
  %s948 = scalar_lea.vmem %s9, 1
  %v949 = vld [vmem:[%s948] sm:$0x1]
  %s950 = scalar_lea.vmem %s10, 1
  %v951 = vld [vmem:[%s950] sm:$0x1]
  %s952 = scalar_lea.vmem %s11, 1
  %v953 = vld [vmem:[%s952] sm:$0x1]
  %s954 = scalar_lea.vmem %s12, 1
  %v955 = vld [vmem:[%s954] sm:$0x1]
  %s956 = scalar_lea.vmem %s13, 1
  %v957 = vld [vmem:[%s956] sm:$0x1]
  %s958 = scalar_lea.vmem %s14, 1
  %v959 = vld [vmem:[%s958] sm:$0x1]
  %v960 = vpack.c.bf16 %v925, %v924
  %v962 = vperm.slane %v945, 0
  %v968 = vunpack.c.l.b16 %v927
  %v969 = vunpack.c.l.b16 %v928
  %v970 = vunpack.c.l.b16 %v929
  %v971 = vunpack.c.l.b16 %v930
  %v972 = vpack.c.b16 %v969, %v968
  %v973 = vpack.c.b16 %v971, %v970
  %v977 = vsel %vm608, %v960, 0
  %979 = vmatpush.bf16.msra.mxu0 0
  %980 = vmatpush.bf16.msra.mxu0 0
  %981 = vmatpush.bf16.msra.mxu0 0
  %982 = vmatpush.bf16.msra.mxu0 0
  %983 = vmatpush.bf16.msra.mxu0 0
  %984 = vmatpush.bf16.msra.mxu0 0
  %985 = vmatpush.bf16.msra.mxu0 %v973
  %986 = vmatpush.bf16.msra.mxu0 %v972
  %987 = vmatmul.bf16.gmra.mxu0 %v977
  %v988 = vpop.f32.mrf.mxu0
  %v989 = vadd.f32 %v962, %v988
  %v990 = vpop.f32.mrf.mxu0
  %v991 = vadd.f32 %v962, %v990
  %992 = vdwg.mxu0
  %994 = vrot.lane.b32.xlu0 %v989, 96
  %v995 = vpop.permute.xlu0 %994
  %v997 = vmul.f32 %v989, %v995
  %999 = vrot.lane.b32.xlu0 %v991, 96
  %v1000 = vpop.permute.xlu0 %999
  %v1002 = vmul.f32 %v989, %v1000
  %v1003 = vmul.f32 %v991, %v995
  %v1004 = vmul.f32 %v991, %v1000
  %v1005 = vpack.c.bf16 %v1002, %v997
  %v1006 = vpack.c.bf16 %v1004, %v1003
  %v1008 = vsel %vm608, %v1005, 0
  %v1011 = vsel %vm608, %v1006, 0
  %1013 = vmatpush.bf16.msra.mxu0 0
  %1014 = vmatpush.bf16.msra.mxu0 0
  %1015 = vmatpush.bf16.msra.mxu0 0
  %1016 = vmatpush.bf16.msra.mxu0 0
  %1017 = vmatpush.bf16.msra.mxu0 0
  %1018 = vmatpush.bf16.msra.mxu0 0
  %1019 = vmatpush.bf16.msra.mxu0 %v649
  %1020 = vmatpush.bf16.msra.mxu0 %v648
  %1021 = vmatmul.bf16.gmra.mxu0 %v1008
  %v1022 = vpop.f32.mrf.mxu0
  %v1023 = vadd.f32 0.0, %v1022
  %v1024 = vpop.f32.mrf.mxu0
  %v1025 = vadd.f32 0.0, %v1024
  %1026 = vmatmul.bf16.gmra.mxu0 %v1011
  %v1027 = vpop.f32.mrf.mxu0
  %v1028 = vadd.f32 0.0, %v1027
  %v1029 = vpop.f32.mrf.mxu0
  %v1030 = vadd.f32 0.0, %v1029
  %1031 = vdwg.mxu0
  %v1032 = vmax.f32 %v1023, %v1025
  %v1033 = vsub.f32 %v1023, %v1032
  %v1034 = vmul.f32 %v1033, 1.442695
  %v1035 = vpow.pop %v1034
  %v1036 = vsub.f32 %v1025, %v1032
  %v1037 = vmul.f32 %v1036, 1.442695
  %v1038 = vpow.pop %v1037
  %v1039 = vadd.f32 %v1035, %v1038
  %v1040 = vrcp.pop %v1039
  %v1041 = vmul.f32 %v1035, %v1040
  %1042 = vrot.lane.b32.xlu0 %v989, 64
  %v1043 = vpop.permute.xlu0 %1042
  %v1045 = vmul.f32 %v1041, %v1043
  %v1046 = vmul.f32 %v1038, %v1040
  %1047 = vrot.lane.b32.xlu0 %v991, 64
  %v1048 = vpop.permute.xlu0 %1047
  %v1050 = vmul.f32 %v1046, %v1048
  %v1051 = vadd.f32 %v1045, %v1050
  %v1052 = vmax.f32 %v1028, %v1030
  %v1053 = vsub.f32 %v1028, %v1052
  %v1054 = vmul.f32 %v1053, 1.442695
  %v1055 = vpow.pop %v1054
  %v1056 = vsub.f32 %v1030, %v1052
  %v1057 = vmul.f32 %v1056, 1.442695
  %v1058 = vpow.pop %v1057
  %v1059 = vadd.f32 %v1055, %v1058
  %v1060 = vrcp.pop %v1059
  %v1061 = vmul.f32 %v1055, %v1060
  %v1062 = vmul.f32 %v1061, %v1043
  %v1063 = vmul.f32 %v1058, %v1060
  %v1064 = vmul.f32 %v1063, %v1048
  %v1065 = vadd.f32 %v1062, %v1064
  %v1066 = vpack.c.bf16 %v1065, %v1051
  %v1068 = vperm.slane %v947, 0
  %v1074 = vunpack.c.l.b16 %v932
  %v1075 = vunpack.c.l.b16 %v933
  %v1076 = vunpack.c.l.b16 %v934
  %v1077 = vunpack.c.l.b16 %v935
  %v1078 = vpack.c.b16 %v1075, %v1074
  %v1079 = vpack.c.b16 %v1077, %v1076
  %v1083 = vsel %vm608, %v1066, 0
  %1085 = vmatpush.bf16.msra.mxu0 0
  %1086 = vmatpush.bf16.msra.mxu0 0
  %1087 = vmatpush.bf16.msra.mxu0 0
  %1088 = vmatpush.bf16.msra.mxu0 0
  %1089 = vmatpush.bf16.msra.mxu0 0
  %1090 = vmatpush.bf16.msra.mxu0 0
  %1091 = vmatpush.bf16.msra.mxu0 %v1079
  %1092 = vmatpush.bf16.msra.mxu0 %v1078
  %1093 = vmatmul.bf16.gmra.mxu0 %v1083
  %v1094 = vpop.f32.mrf.mxu0
  %v1095 = vadd.f32 %v1068, %v1094
  %v1096 = vpop.f32.mrf.mxu0
  %v1097 = vadd.f32 %v1068, %v1096
  %1098 = vdwg.mxu0
  %v1099 = vadd.f32 %v924, %v1095
  %v1100 = vadd.f32 %v925, %v1097
  %v1101 = vsel %vm608, %v1099, 0.0
  %1102 = vadd.xlane.f32.xlu0 %v1101
  %v1103 = vpop.xlane.xlu0 %1102
  %v1104 = vsel %vm608, %v1100, 0.0
  %1105 = vadd.xlane.f32.xlu0 %v1104
  %v1106 = vpop.xlane.xlu0 %1105
  %v1107 = vmul.f32 %v1103, %v758
  %v1108 = vmul.f32 %v1106, %v758
  %v1109 = vsub.f32 %v1099, %v1107
  %v1110 = vsub.f32 %v1100, %v1108
  %v1111 = vmul.f32 %v1109, %v1109
  %v1112 = vmul.f32 %v1110, %v1110
  %v1113 = vsel %vm608, %v1111, 0.0
  %1114 = vadd.xlane.f32.xlu0 %v1113
  %v1115 = vpop.xlane.xlu0 %1114
  %v1116 = vsel %vm608, %v1112, 0.0
  %1117 = vadd.xlane.f32.xlu0 %v1116
  %v1118 = vpop.xlane.xlu0 %1117
  %v1119 = vmul.f32 %v1115, %v758
  %v1120 = vmul.f32 %v1118, %v758
  %v1121 = vadd.f32 %v1119, 1e-05
  %v1122 = vadd.f32 %v1120, 1e-05
  %v1123 = vrsqrt.pop %v1121
  %v1124 = vmul.f32 %v1123, %v1121
  %v1125 = vmul.f32 %v1124, %v1123
  %v1126 = vmul.f32 0.5, %v1125
  %v1127 = vsub.f32 1.5, %v1126
  %v1128 = vmul.f32 %v1123, %v1127
  %vm1129 = vweird.f32 %v1121
  %vm1130 = vweird.f32 %v1123
  %vm1131 = vmor %vm1129, %vm1130
  %v1132 = vsel %vm1131, %v1123, %v1128
  %v1133 = vrsqrt.pop %v1122
  %v1134 = vmul.f32 %v1133, %v1122
  %v1135 = vmul.f32 %v1134, %v1133
  %v1136 = vmul.f32 0.5, %v1135
  %v1137 = vsub.f32 1.5, %v1136
  %v1138 = vmul.f32 %v1133, %v1137
  %vm1139 = vweird.f32 %v1122
  %vm1140 = vweird.f32 %v1133
  %vm1141 = vmor %vm1139, %vm1140
  %v1142 = vsel %vm1141, %v1133, %v1138
  %v1143 = vmul.f32 %v1109, %v1132
  %v1144 = vmul.f32 %v1110, %v1142
  %v1146 = vperm.slane %v949, 0
  %v1148 = vmul.f32 %v1143, %v1146
  %v1149 = vmul.f32 %v1144, %v1146
  %v1151 = vperm.slane %v951, 0
  %v1153 = vadd.f32 %v1148, %v1151
  %v1154 = vadd.f32 %v1149, %v1151
  %v1155 = vpack.c.bf16 %v1154, %v1153
  %v1157 = vperm.slane %v953, 0
  %v1163 = vunpack.c.l.b16 %v937
  %v1164 = vunpack.c.l.b16 %v938
  %v1165 = vunpack.c.l.b16 %v939
  %v1166 = vunpack.c.l.b16 %v940
  %v1167 = vpack.c.b16 %v1164, %v1163
  %v1168 = vpack.c.b16 %v1166, %v1165
  %v1172 = vsel %vm608, %v1155, 0
  %1174 = vmatpush.bf16.msra.mxu0 0
  %1175 = vmatpush.bf16.msra.mxu0 0
  %1176 = vmatpush.bf16.msra.mxu0 0
  %1177 = vmatpush.bf16.msra.mxu0 0
  %1178 = vmatpush.bf16.msra.mxu0 0
  %1179 = vmatpush.bf16.msra.mxu0 0
  %1180 = vmatpush.bf16.msra.mxu0 %v1168
  %1181 = vmatpush.bf16.msra.mxu0 %v1167
  %1182 = vmatmul.bf16.gmra.mxu0 %v1172
  %v1183 = vpop.f32.mrf.mxu0
  %v1184 = vadd.f32 %v1157, %v1183
  %v1185 = vpop.f32.mrf.mxu0
  %v1186 = vadd.f32 %v1157, %v1185
  %1187 = vdwg.mxu0
  %v1188 = vmax.f32 %v1184, 0.0
  %v1189 = vmax.f32 %v1186, 0.0
  %v1190 = vpack.c.bf16 %v1189, %v1188
  %v1192 = vperm.slane %v955, 0
  %v1196 = vunpack.c.l.b16 %v942
  %v1197 = vunpack.c.l.b16 %v943
  %v1198 = vpack.c.b16 %v1197, %v1196
  %v1201 = vsel %vm852, %v1190, 0
  %1203 = vmatpush.bf16.msra.mxu0 0
  %1204 = vmatpush.bf16.msra.mxu0 0
  %1205 = vmatpush.bf16.msra.mxu0 0
  %1206 = vmatpush.bf16.msra.mxu0 0
  %1207 = vmatpush.bf16.msra.mxu0 0
  %1208 = vmatpush.bf16.msra.mxu0 0
  %1209 = vmatpush.bf16.msra.mxu0 0
  %1210 = vmatpush.bf16.msra.mxu0 %v1198
  %1211 = vmatmul.bf16.gmra.mxu0 %v1201
  %v1212 = vpop.f32.mrf.mxu0
  %v1213 = vadd.f32 %v1192, %v1212
  %v1214 = vpop.f32.mrf.mxu0
  %v1215 = vadd.f32 %v1192, %v1214
  %1216 = vdwg.mxu0
  %v1217 = vadd.f32 %v1153, %v1213
  %v1218 = vadd.f32 %v1154, %v1215
  %v1219 = vsel %vm608, %v1217, 0.0
  %1220 = vadd.xlane.f32.xlu0 %v1219
  %v1221 = vpop.xlane.xlu0 %1220
  %v1222 = vsel %vm608, %v1218, 0.0
  %1223 = vadd.xlane.f32.xlu0 %v1222
  %v1224 = vpop.xlane.xlu0 %1223
  %v1225 = vmul.f32 %v1221, %v758
  %v1226 = vmul.f32 %v1224, %v758
  %v1227 = vsub.f32 %v1217, %v1225
  %v1228 = vsub.f32 %v1218, %v1226
  %v1229 = vmul.f32 %v1227, %v1227
  %v1230 = vmul.f32 %v1228, %v1228
  %v1231 = vsel %vm608, %v1229, 0.0
  %1232 = vadd.xlane.f32.xlu0 %v1231
  %v1233 = vpop.xlane.xlu0 %1232
  %v1234 = vsel %vm608, %v1230, 0.0
  %1235 = vadd.xlane.f32.xlu0 %v1234
  %v1236 = vpop.xlane.xlu0 %1235
  %v1237 = vmul.f32 %v1233, %v758
  %v1238 = vmul.f32 %v1236, %v758
  %v1239 = vadd.f32 %v1237, 1e-05
  %v1240 = vadd.f32 %v1238, 1e-05
  %v1241 = vrsqrt.pop %v1239
  %v1242 = vmul.f32 %v1241, %v1239
  %v1243 = vmul.f32 %v1242, %v1241
  %v1244 = vmul.f32 0.5, %v1243
  %v1245 = vsub.f32 1.5, %v1244
  %v1246 = vmul.f32 %v1241, %v1245
  %vm1247 = vweird.f32 %v1239
  %vm1248 = vweird.f32 %v1241
  %vm1249 = vmor %vm1247, %vm1248
  %v1250 = vsel %vm1249, %v1241, %v1246
  %v1251 = vrsqrt.pop %v1240
  %v1252 = vmul.f32 %v1251, %v1240
  %v1253 = vmul.f32 %v1252, %v1251
  %v1254 = vmul.f32 0.5, %v1253
  %v1255 = vsub.f32 1.5, %v1254
  %v1256 = vmul.f32 %v1251, %v1255
  %vm1257 = vweird.f32 %v1240
  %vm1258 = vweird.f32 %v1251
  %vm1259 = vmor %vm1257, %vm1258
  %v1260 = vsel %vm1259, %v1251, %v1256
  %v1261 = vmul.f32 %v1227, %v1250
  %v1262 = vmul.f32 %v1228, %v1260
  %v1264 = vperm.slane %v957, 0
  %v1266 = vmul.f32 %v1261, %v1264
  %v1267 = vmul.f32 %v1262, %v1264
  %v1269 = vperm.slane %v959, 0
  %v1271 = vadd.f32 %v1266, %v1269
  %v1272 = vadd.f32 %v1267, %v1269
  %v1273 = vpack.c.bf16 %v1272, %v1271
  %v1274 = vld [vmem:[%s16] sm:$0xf]
  %v1275 = vld [vmem:[%s16 + $0x4] sm:$0xf]
  %v1276 = vld [vmem:[%s16 + $0x8] sm:$0xf]
  %v1277 = vld [vmem:[%s16 + $0xc] sm:$0xf]
  %v1278 = vld [vmem:[%s17] sm:$0x1]
  %v1280 = vperm.slane %v1278, 0
  %v1286 = vunpack.c.l.b16 %v1274
  %v1287 = vunpack.c.l.b16 %v1275
  %v1288 = vunpack.c.l.b16 %v1276
  %v1289 = vunpack.c.l.b16 %v1277
  %v1290 = vpack.c.b16 %v1287, %v1286
  %v1291 = vpack.c.b16 %v1289, %v1288
  %v1295 = vsel %vm608, %v1273, 0
  %1297 = vmatpush.bf16.msra.mxu0 0
  %1298 = vmatpush.bf16.msra.mxu0 0
  %1299 = vmatpush.bf16.msra.mxu0 0
  %1300 = vmatpush.bf16.msra.mxu0 0
  %1301 = vmatpush.bf16.msra.mxu0 0
  %1302 = vmatpush.bf16.msra.mxu0 0
  %1303 = vmatpush.bf16.msra.mxu0 %v1291
  %1304 = vmatpush.bf16.msra.mxu0 %v1290
  %1305 = vmatmul.bf16.gmra.mxu0 %v1295
  %v1306 = vpop.f32.mrf.mxu0
  %v1307 = vadd.f32 %v1280, %v1306
  %v1308 = vpop.f32.mrf.mxu0
  %v1309 = vadd.f32 %v1280, %v1308
  %1310 = vdwg.mxu0
  %1311 = vst [vmem:[%s18] sm:$0xff] %v1307
  %1312 = vst [vmem:[%s18 + $0x8] sm:$0xff] %v1309
  // Predicated region
  $region74: #{vit_forward_pallas.1} parent=0 // pred_check
    _
  $region75: #{vit_forward_pallas.1} parent=0 // pred_check_branch
    %1314 = sbr.rel (0) target = $region77
  $region76: #{vit_forward_pallas.1} parent=0 // pred_region
    _
  $region77: #{vit_forward_pallas.1} parent=0 // pred_fallthru
    _
  // Predicated region
  $region78: #{vit_forward_pallas.1} parent=0 // pred_check
    _
  $region79: #{vit_forward_pallas.1} parent=0 // pred_check_branch
    %1316 = sbr.rel (0) target = $region81
  $region80: #{vit_forward_pallas.1} parent=0 // pred_region
    _
  $region81: #{vit_forward_pallas.1} parent=0 // pred_fallthru
    _

</llo_original>
